<compile_context>
chip_gen: v7x
topology: tpu7x:2x2x1
jax: 0.10.0
libtpu: 0.0.40
codegen_flags: <defaults>
</compile_context>

<pallas_src>
import functools

import numpy as np
import jax
import jax.numpy as jnp
from jax import lax
from jax.experimental import pallas as pl
from jax.experimental.pallas import tpu as pltpu

KSIZE = 7
PAD = KSIZE // 2
CENTER = PAD * KSIZE + PAD  # index of the (dh=0, dw=0) tap


def cbam_kernel(x_ref, w12_ref, masks_ref, o_ref, pooled_ref, ca_ref, *,
                nb, C, Cr, H, W):
    """One grid step processes nb samples.

    x_ref/o_ref : (nb*C, H*W) f32, lane-dense.
    w12_ref     : (C, 2*Cr) = [w1.T | w2].
    masks_ref   : (49, 2*nb, H*W) edge-validity masks pre-multiplied by the
                  7x7 conv weights (rows 0..nb-1: avg channel, nb..2nb-1: max).
    pooled_ref  : (2*nb, H*W) VMEM scratch (fused avg/max channel maps).
    ca_ref      : (nb*C, 1)  VMEM scratch (per-channel attention).
    """
    HW = H * W
    inv_hw = 1.0 / float(HW)
    inv_c = 1.0 / float(C)

    w12 = w12_ref[...]                                        # (C, 2*Cr)

    # ---- hoisted spatial pooling over all nb*C channels at once ----
    avg_all = jnp.sum(x_ref[...], axis=1, keepdims=True) * inv_hw  # (nb*C, 1)
    max_all = jnp.max(x_ref[...], axis=1, keepdims=True)           # (nb*C, 1)

    # ---- channel attention (tiny FC on the VPU) + fused channel pooling ----
    for n in range(nb):
        avg_p = avg_all[n * C:(n + 1) * C, :]                 # (C, 1)
        max_p = max_all[n * C:(n + 1) * C, :]                 # (C, 1)

        o = jnp.zeros((C, 1), jnp.float32)
        for r in range(Cr):
            w1c = w12[:, r:r + 1]                             # (C, 1)
            ha = jnp.maximum(jnp.sum(avg_p * w1c, axis=0, keepdims=True), 0.0)
            hm = jnp.maximum(jnp.sum(max_p * w1c, axis=0, keepdims=True), 0.0)
            o = o + (ha + hm) * w12[:, Cr + r:Cr + r + 1]     # (C, 1)
        ca = jax.nn.sigmoid(o)                                # (C, 1)
        ca_ref[pl.ds(n * C, C), :] = ca

        # out1 for this sample only lives inside this loop iteration.
        out1 = x_ref[pl.ds(n * C, C), :] * ca                 # (C, HW)
        pooled_ref[pl.ds(n, 1), :] = jnp.sum(out1, axis=0, keepdims=True) * inv_c
        pooled_ref[pl.ds(nb + n, 1), :] = jnp.max(out1, axis=0, keepdims=True)

    # ---- spatial attention: 7x7 'SAME' conv via one roll per tap ----
    pooled = pooled_ref[...]                                  # (2*nb, HW)
    acc2 = masks_ref[CENTER] * pooled                         # centre tap, no roll
    for dh in range(-PAD, PAD + 1):
        for dw in range(-PAD, PAD + 1):
            if dh == 0 and dw == 0:
                continue
            kidx = (dh + PAD) * KSIZE + (dw + PAD)
            shift = (-(dh * W + dw)) % HW
            sh = pooled if shift == 0 else pltpu.roll(pooled, shift=shift, axis=1)
            acc2 = acc2 + masks_ref[kidx] * sh

    sa = jax.nn.sigmoid(acc2[0:nb, :] + acc2[nb:2 * nb, :])   # (nb, HW)

    # ---- final scaling: recompute out1 = x * ca, then * sa (lane-dense vst) ----
    for n in range(nb):
        ca_n = ca_ref[pl.ds(n * C, C), :]                     # (C, 1)
        xs = x_ref[pl.ds(n * C, C), :]                        # (C, HW)
        o_ref[pl.ds(n * C, C), :] = xs * ca_n * sa[n:n + 1, :]


def _spatial_edge_masks(H, W):
    """(49, H*W) f32 validity masks for the 7x7 'SAME'-padded conv taps."""
    HW = H * W
    ii, jj = np.divmod(np.arange(HW), W)
    masks = np.zeros((KSIZE * KSIZE, HW), np.float32)
    for dh in range(-PAD, PAD + 1):
        for dw in range(-PAD, PAD + 1):
            k = (dh + PAD) * KSIZE + (dw + PAD)
            masks[k] = ((ii + dh >= 0) & (ii + dh < H) &
                        (jj + dw >= 0) & (jj + dw < W)).astype(np.float32)
    return masks


def _pick_nb(N):
    """Samples per grid step: keep >= 2 grid steps when possible (pipelining +
    v7x's two TensorCores), capped at 4 so 2*nb fills the 8 sublanes."""
    if N <= 1:
        return 1
    cap = max(1, min(4, N // 2))
    for cand in range(cap, 0, -1):
        if N % cand == 0:
            return cand
    return 1


def basic_block_forward(x, w1, w2, w_sa):
    """x: (N, C, H, W); w1: (C//16, C); w2: (C, C//16); w_sa: (1, 2, 7, 7)."""
    N, C, H, W = x.shape
    Cr = w1.shape[0]
    HW = H * W
    nb = _pick_nb(N)

    # Lane-dense 2-D views (contiguous reshape, free in HBM).
    x2d = x.reshape(N * C, HW).astype(jnp.float32)
    # Merged FC weights: [w1.T | w2] -> (C, 2*Cr), single operand / DMA.
    w12 = jnp.concatenate([jnp.transpose(w1), w2], axis=1).astype(jnp.float32)

    # Fold the 7x7 conv weights into the edge masks:
    # masks_w[k, j, :] = mask[k, :] * (w_avg[k] if j < nb else w_max[k]).
    masks = jnp.asarray(_spatial_edge_masks(H, W))              # (49, HW)
    wflat = w_sa.reshape(2, KSIZE * KSIZE).astype(jnp.float32)  # (2, 49)
    mw = masks[None, :, :] * wflat[:, :, None]                  # (2, 49, HW)
    mw = jnp.repeat(mw, nb, axis=0)                             # (2*nb, 49, HW)
    masks_w = jnp.transpose(mw, (1, 0, 2))                      # (49, 2*nb, HW)

    kernel = functools.partial(cbam_kernel, nb=nb, C=C, Cr=Cr, H=H, W=W)
    out2d = pl.pallas_call(
        kernel,
        out_shape=jax.ShapeDtypeStruct((N * C, HW), jnp.float32),
        grid_spec=pltpu.PrefetchScalarGridSpec(
            num_scalar_prefetch=0,
            grid=(N // nb,),
            in_specs=[
                pl.BlockSpec((nb * C, HW), lambda n: (n, 0)),
                pl.BlockSpec((C, 2 * Cr), lambda n: (0, 0)),
                pl.BlockSpec((KSIZE * KSIZE, 2 * nb, HW), lambda n: (0, 0, 0)),
            ],
            out_specs=pl.BlockSpec((nb * C, HW), lambda n: (n, 0)),
            scratch_shapes=[
                pltpu.VMEM((2 * nb, HW), jnp.float32),   # fused avg/max maps
                pltpu.VMEM((nb * C, 1), jnp.float32),    # channel attention
            ]),
        compiler_params=pltpu.CompilerParams(
            dimension_semantics=("parallel",)),
    )(x2d, w12, masks_w)
    return out2d.reshape(N, C, H, W).astype(x.dtype)


def ref_forward(x, w1, w2, w_sa):
    """Pure-JAX reference mirroring the PyTorch BasicBlock.forward."""
    avg = jnp.mean(x, axis=(2, 3), keepdims=True)
    mx = jnp.max(x, axis=(2, 3), keepdims=True)

    def fc(v):
        h = jnp.einsum("rc,nchw->nrhw", w1, v)
        h = jnp.maximum(h, 0.0)
        return jnp.einsum("cr,nrhw->nchw", w2, h)

    ca = jax.nn.sigmoid(fc(avg) + fc(mx))
    out1 = x * ca

    avg_c = jnp.mean(out1, axis=1, keepdims=True)
    max_c = jnp.max(out1, axis=1, keepdims=True)
    cat = jnp.concatenate([avg_c, max_c], axis=1)
    conv = lax.conv_general_dilated(
        cat, w_sa, window_strides=(1, 1), padding="SAME",
        dimension_numbers=("NCHW", "OIHW", "NCHW"))
    sa = jax.nn.sigmoid(conv)
    return out1 * sa


if __name__ == "__main__":
    # planes must be >= 16 so that planes // 16 >= 1 (as in the PyTorch module)
    N, C, H, W = 2, 32, 16, 16
    Cr = C // 16

    key = jax.random.PRNGKey(0)
    k1, k2, k3, k4 = jax.random.split(key, 4)
    x = jax.random.normal(k1, (N, C, H, W), dtype=jnp.float32)
    # ChannelAttention.fc: Conv2d(C, C//16, 1, bias=False) -> weight (Cr, C)
    #                      Conv2d(C//16, C, 1, bias=False) -> weight (C, Cr)
    w1 = jax.random.normal(k2, (Cr, C), dtype=jnp.float32) * 0.1
    w2 = jax.random.normal(k3, (C, Cr), dtype=jnp.float32) * 0.1
    # SpatialAttention.conv1: Conv2d(2, 1, 7, padding=3, bias=False) -> (1, 2, 7, 7)
    w_sa = jax.random.normal(k4, (1, 2, KSIZE, KSIZE), dtype=jnp.float32) * 0.1

    out = basic_block_forward(x, w1, w2, w_sa)
    out = jax.block_until_ready(out)

    ref = ref_forward(x, w1, w2, w_sa)
    assert out.shape == ref.shape and out.dtype == ref.dtype
    assert jnp.allclose(out, ref, atol=1e-5, rtol=1e-5), "Pallas output mismatch vs reference"
    print("KERNEL_OK")
</pallas_src>

<mosaic_0001>
module attributes {stable_mosaic.version = 11 : i64} {
  func.func @cbam_kernel(%arg0: i32, %arg1: memref<32x256xf32, #tpu.memory_space<vmem>>, %arg2: memref<32x4xf32, #tpu.memory_space<vmem>>, %arg3: memref<49x2x256xf32, #tpu.memory_space<vmem>>, %arg4: memref<32x256xf32, #tpu.memory_space<vmem>>, %arg5: memref<2x256xf32, #tpu.memory_space<vmem>>, %arg6: memref<32x1xf32, #tpu.memory_space<vmem>>) attributes {dimension_semantics = [#tpu.dimension_semantics<parallel>], iteration_bounds = array<i64: 2>, scalar_prefetch = 0 : i64, scratch_operands = 2 : i64, tpu.core_type = #tpu.core_type<tc>, window_params = [{transform_indices = @transform_0, window_bounds = array<i64: 32, 256>}, {pipeline_mode = #tpu.pipeline_mode<synchronous>, transform_indices = @transform_1, window_bounds = array<i64: 32, 4>}, {pipeline_mode = #tpu.pipeline_mode<synchronous>, transform_indices = @transform_2, window_bounds = array<i64: 49, 2, 256>}, {transform_indices = @transform_3, window_bounds = array<i64: 32, 256>}]} {
    %c0 = arith.constant 0 : index
    %c0_0 = arith.constant 0 : index
    %0 = vector.load %arg2[%c0, %c0_0] : memref<32x4xf32, #tpu.memory_space<vmem>>, vector<32x4xf32>
    %c0_1 = arith.constant 0 : index
    %c0_2 = arith.constant 0 : index
    %1 = vector.load %arg1[%c0_1, %c0_2] : memref<32x256xf32, #tpu.memory_space<vmem>>, vector<32x256xf32>
    %cst = arith.constant dense<0.000000e+00> : vector<32xf32>
    %2 = vector.multi_reduction <add>, %1, %cst [1] : vector<32x256xf32> to vector<32xf32>
    %3 = vector.shape_cast %2 : vector<32xf32> to vector<32x1xf32>
    %cst_3 = arith.constant 3.906250e-03 : f32
    %4 = vector.broadcast %cst_3 : f32 to vector<32x1xf32>
    %5 = arith.mulf %3, %4 : vector<32x1xf32>
    %c0_4 = arith.constant 0 : index
    %c0_5 = arith.constant 0 : index
    %6 = vector.load %arg1[%c0_4, %c0_5] : memref<32x256xf32, #tpu.memory_space<vmem>>, vector<32x256xf32>
    %cst_6 = arith.constant dense<0xFF800000> : vector<32xf32>
    %7 = vector.multi_reduction <maximumf>, %6, %cst_6 [1] : vector<32x256xf32> to vector<32xf32>
    %8 = vector.shape_cast %7 : vector<32xf32> to vector<32x1xf32>
    %cst_7 = arith.constant 0.000000e+00 : f32
    %9 = vector.broadcast %cst_7 : f32 to vector<32x1xf32>
    %10 = vector.extract_strided_slice %0 {offsets = [0, 0], sizes = [32, 1], strides = [1, 1]} : vector<32x4xf32> to vector<32x1xf32>
    %11 = arith.mulf %5, %10 : vector<32x1xf32>
    %cst_8 = arith.constant dense<0.000000e+00> : vector<1xf32>
    %12 = vector.multi_reduction <add>, %11, %cst_8 [0] : vector<32x1xf32> to vector<1xf32>
    %13 = vector.shape_cast %12 : vector<1xf32> to vector<1x1xf32>
    %cst_9 = arith.constant 0.000000e+00 : f32
    %14 = vector.broadcast %cst_9 : f32 to vector<1x1xf32>
    %15 = arith.maximumf %13, %14 : vector<1x1xf32>
    %16 = arith.mulf %8, %10 : vector<32x1xf32>
    %cst_10 = arith.constant dense<0.000000e+00> : vector<1xf32>
    %17 = vector.multi_reduction <add>, %16, %cst_10 [0] : vector<32x1xf32> to vector<1xf32>
    %18 = vector.shape_cast %17 : vector<1xf32> to vector<1x1xf32>
    %cst_11 = arith.constant 0.000000e+00 : f32
    %19 = vector.broadcast %cst_11 : f32 to vector<1x1xf32>
    %20 = arith.maximumf %18, %19 : vector<1x1xf32>
    %21 = arith.addf %15, %20 : vector<1x1xf32>
    %22 = vector.extract_strided_slice %0 {offsets = [0, 2], sizes = [32, 1], strides = [1, 1]} : vector<32x4xf32> to vector<32x1xf32>
    %23 = vector.broadcast %21 : vector<1x1xf32> to vector<32x1xf32>
    %24 = arith.mulf %23, %22 : vector<32x1xf32>
    %25 = arith.addf %9, %24 : vector<32x1xf32>
    %26 = vector.extract_strided_slice %0 {offsets = [0, 1], sizes = [32, 1], strides = [1, 1]} : vector<32x4xf32> to vector<32x1xf32>
    %27 = arith.mulf %5, %26 : vector<32x1xf32>
    %cst_12 = arith.constant dense<0.000000e+00> : vector<1xf32>
    %28 = vector.multi_reduction <add>, %27, %cst_12 [0] : vector<32x1xf32> to vector<1xf32>
    %29 = vector.shape_cast %28 : vector<1xf32> to vector<1x1xf32>
    %cst_13 = arith.constant 0.000000e+00 : f32
    %30 = vector.broadcast %cst_13 : f32 to vector<1x1xf32>
    %31 = arith.maximumf %29, %30 : vector<1x1xf32>
    %32 = arith.mulf %8, %26 : vector<32x1xf32>
    %cst_14 = arith.constant dense<0.000000e+00> : vector<1xf32>
    %33 = vector.multi_reduction <add>, %32, %cst_14 [0] : vector<32x1xf32> to vector<1xf32>
    %34 = vector.shape_cast %33 : vector<1xf32> to vector<1x1xf32>
    %cst_15 = arith.constant 0.000000e+00 : f32
    %35 = vector.broadcast %cst_15 : f32 to vector<1x1xf32>
    %36 = arith.maximumf %34, %35 : vector<1x1xf32>
    %37 = arith.addf %31, %36 : vector<1x1xf32>
    %38 = vector.extract_strided_slice %0 {offsets = [0, 3], sizes = [32, 1], strides = [1, 1]} : vector<32x4xf32> to vector<32x1xf32>
    %39 = vector.broadcast %37 : vector<1x1xf32> to vector<32x1xf32>
    %40 = arith.mulf %39, %38 : vector<32x1xf32>
    %41 = arith.addf %25, %40 : vector<32x1xf32>
    %42 = arith.negf %41 : vector<32x1xf32>
    %43 = math.exp %42 : vector<32x1xf32>
    %cst_16 = arith.constant 1.000000e+00 : f32
    %44 = vector.broadcast %cst_16 : f32 to vector<32x1xf32>
    %45 = arith.addf %44, %43 : vector<32x1xf32>
    %46 = arith.divf %44, %45 : vector<32x1xf32>
    %c0_17 = arith.constant 0 : index
    %c0_18 = arith.constant 0 : index
    %47 = vector.load %arg6[%c0_17, %c0_18] : memref<32x1xf32, #tpu.memory_space<vmem>>, vector<32x1xf32>
    tpu.vector_store %arg6[%c0_17, %c0_18], %46 {strides = array<i32>} : memref<32x1xf32, #tpu.memory_space<vmem>>, vector<32x1xf32>,
    %c0_19 = arith.constant 0 : index
    %c0_20 = arith.constant 0 : index
    %48 = vector.load %arg1[%c0_19, %c0_20] : memref<32x256xf32, #tpu.memory_space<vmem>>, vector<32x256xf32>
    %49 = vector.broadcast %46 : vector<32x1xf32> to vector<32x256xf32>
    %50 = arith.mulf %48, %49 : vector<32x256xf32>
    %cst_21 = arith.constant dense<0.000000e+00> : vector<256xf32>
    %51 = vector.multi_reduction <add>, %50, %cst_21 [0] : vector<32x256xf32> to vector<256xf32>
    %52 = vector.shape_cast %51 : vector<256xf32> to vector<1x256xf32>
    %cst_22 = arith.constant 3.125000e-02 : f32
    %53 = vector.broadcast %cst_22 : f32 to vector<1x256xf32>
    %54 = arith.mulf %52, %53 : vector<1x256xf32>
    %c0_23 = arith.constant 0 : index
    %c0_24 = arith.constant 0 : index
    %55 = vector.load %arg5[%c0_23, %c0_24] : memref<2x256xf32, #tpu.memory_space<vmem>>, vector<1x256xf32>
    tpu.vector_store %arg5[%c0_23, %c0_24], %54 {strides = array<i32>} : memref<2x256xf32, #tpu.memory_space<vmem>>, vector<1x256xf32>,
    %cst_25 = arith.constant dense<0xFF800000> : vector<256xf32>
    %56 = vector.multi_reduction <maximumf>, %50, %cst_25 [0] : vector<32x256xf32> to vector<256xf32>
    %57 = vector.shape_cast %56 : vector<256xf32> to vector<1x256xf32>
    %c1 = arith.constant 1 : index
    %c0_26 = arith.constant 0 : index
    %58 = vector.load %arg5[%c1, %c0_26] : memref<2x256xf32, #tpu.memory_space<vmem>>, vector<1x256xf32>
    tpu.vector_store %arg5[%c1, %c0_26], %57 {strides = array<i32>} : memref<2x256xf32, #tpu.memory_space<vmem>>, vector<1x256xf32>,
    %c0_27 = arith.constant 0 : index
    %c0_28 = arith.constant 0 : index
    %59 = vector.load %arg5[%c0_27, %c0_28] : memref<2x256xf32, #tpu.memory_space<vmem>>, vector<2x256xf32>
    %c24 = arith.constant 24 : index
    %c0_29 = arith.constant 0 : index
    %c0_30 = arith.constant 0 : index
    %60 = vector.load %arg3[%c24, %c0_29, %c0_30] : memref<49x2x256xf32, #tpu.memory_space<vmem>>, vector<1x2x256xf32>
    %61 = vector.shape_cast %60 : vector<1x2x256xf32> to vector<2x256xf32>
    %62 = arith.mulf %61, %59 : vector<2x256xf32>
    %c51_i32 = arith.constant 51 : i32
    %63 = tpu.dynamic_rotate %59 by %c51_i32 dim 1 : vector<2x256xf32>, i32 -> vector<2x256xf32>
    %c0_31 = arith.constant 0 : index
    %c0_32 = arith.constant 0 : index
    %c0_33 = arith.constant 0 : index
    %64 = vector.load %arg3[%c0_31, %c0_32, %c0_33] : memref<49x2x256xf32, #tpu.memory_space<vmem>>, vector<1x2x256xf32>
    %65 = vector.shape_cast %64 : vector<1x2x256xf32> to vector<2x256xf32>
    %66 = arith.mulf %65, %63 : vector<2x256xf32>
    %67 = arith.addf %62, %66 : vector<2x256xf32>
    %c50_i32 = arith.constant 50 : i32
    %68 = tpu.dynamic_rotate %59 by %c50_i32 dim 1 : vector<2x256xf32>, i32 -> vector<2x256xf32>
    %c1_34 = arith.constant 1 : index
    %c0_35 = arith.constant 0 : index
    %c0_36 = arith.constant 0 : index
    %69 = vector.load %arg3[%c1_34, %c0_35, %c0_36] : memref<49x2x256xf32, #tpu.memory_space<vmem>>, vector<1x2x256xf32>
    %70 = vector.shape_cast %69 : vector<1x2x256xf32> to vector<2x256xf32>
    %71 = arith.mulf %70, %68 : vector<2x256xf32>
    %72 = arith.addf %67, %71 : vector<2x256xf32>
    %c49_i32 = arith.constant 49 : i32
    %73 = tpu.dynamic_rotate %59 by %c49_i32 dim 1 : vector<2x256xf32>, i32 -> vector<2x256xf32>
    %c2 = arith.constant 2 : index
    %c0_37 = arith.constant 0 : index
    %c0_38 = arith.constant 0 : index
    %74 = vector.load %arg3[%c2, %c0_37, %c0_38] : memref<49x2x256xf32, #tpu.memory_space<vmem>>, vector<1x2x256xf32>
    %75 = vector.shape_cast %74 : vector<1x2x256xf32> to vector<2x256xf32>
    %76 = arith.mulf %75, %73 : vector<2x256xf32>
    %77 = arith.addf %72, %76 : vector<2x256xf32>
    %c48_i32 = arith.constant 48 : i32
    %78 = tpu.dynamic_rotate %59 by %c48_i32 dim 1 : vector<2x256xf32>, i32 -> vector<2x256xf32>
    %c3 = arith.constant 3 : index
    %c0_39 = arith.constant 0 : index
    %c0_40 = arith.constant 0 : index
    %79 = vector.load %arg3[%c3, %c0_39, %c0_40] : memref<49x2x256xf32, #tpu.memory_space<vmem>>, vector<1x2x256xf32>
    %80 = vector.shape_cast %79 : vector<1x2x256xf32> to vector<2x256xf32>
    %81 = arith.mulf %80, %78 : vector<2x256xf32>
    %82 = arith.addf %77, %81 : vector<2x256xf32>
    %c47_i32 = arith.constant 47 : i32
    %83 = tpu.dynamic_rotate %59 by %c47_i32 dim 1 : vector<2x256xf32>, i32 -> vector<2x256xf32>
    %c4 = arith.constant 4 : index
    %c0_41 = arith.constant 0 : index
    %c0_42 = arith.constant 0 : index
    %84 = vector.load %arg3[%c4, %c0_41, %c0_42] : memref<49x2x256xf32, #tpu.memory_space<vmem>>, vector<1x2x256xf32>
    %85 = vector.shape_cast %84 : vector<1x2x256xf32> to vector<2x256xf32>
    %86 = arith.mulf %85, %83 : vector<2x256xf32>
    %87 = arith.addf %82, %86 : vector<2x256xf32>
    %c46_i32 = arith.constant 46 : i32
    %88 = tpu.dynamic_rotate %59 by %c46_i32 dim 1 : vector<2x256xf32>, i32 -> vector<2x256xf32>
    %c5 = arith.constant 5 : index
    %c0_43 = arith.constant 0 : index
    %c0_44 = arith.constant 0 : index
    %89 = vector.load %arg3[%c5, %c0_43, %c0_44] : memref<49x2x256xf32, #tpu.memory_space<vmem>>, vector<1x2x256xf32>
    %90 = vector.shape_cast %89 : vector<1x2x256xf32> to vector<2x256xf32>
    %91 = arith.mulf %90, %88 : vector<2x256xf32>
    %92 = arith.addf %87, %91 : vector<2x256xf32>
    %c45_i32 = arith.constant 45 : i32
    %93 = tpu.dynamic_rotate %59 by %c45_i32 dim 1 : vector<2x256xf32>, i32 -> vector<2x256xf32>
    %c6 = arith.constant 6 : index
    %c0_45 = arith.constant 0 : index
    %c0_46 = arith.constant 0 : index
    %94 = vector.load %arg3[%c6, %c0_45, %c0_46] : memref<49x2x256xf32, #tpu.memory_space<vmem>>, vector<1x2x256xf32>
    %95 = vector.shape_cast %94 : vector<1x2x256xf32> to vector<2x256xf32>
    %96 = arith.mulf %95, %93 : vector<2x256xf32>
    %97 = arith.addf %92, %96 : vector<2x256xf32>
    %c35_i32 = arith.constant 35 : i32
    %98 = tpu.dynamic_rotate %59 by %c35_i32 dim 1 : vector<2x256xf32>, i32 -> vector<2x256xf32>
    %c7 = arith.constant 7 : index
    %c0_47 = arith.constant 0 : index
    %c0_48 = arith.constant 0 : index
    %99 = vector.load %arg3[%c7, %c0_47, %c0_48] : memref<49x2x256xf32, #tpu.memory_space<vmem>>, vector<1x2x256xf32>
    %100 = vector.shape_cast %99 : vector<1x2x256xf32> to vector<2x256xf32>
    %101 = arith.mulf %100, %98 : vector<2x256xf32>
    %102 = arith.addf %97, %101 : vector<2x256xf32>
    %c34_i32 = arith.constant 34 : i32
    %103 = tpu.dynamic_rotate %59 by %c34_i32 dim 1 : vector<2x256xf32>, i32 -> vector<2x256xf32>
    %c8 = arith.constant 8 : index
    %c0_49 = arith.constant 0 : index
    %c0_50 = arith.constant 0 : index
    %104 = vector.load %arg3[%c8, %c0_49, %c0_50] : memref<49x2x256xf32, #tpu.memory_space<vmem>>, vector<1x2x256xf32>
    %105 = vector.shape_cast %104 : vector<1x2x256xf32> to vector<2x256xf32>
    %106 = arith.mulf %105, %103 : vector<2x256xf32>
    %107 = arith.addf %102, %106 : vector<2x256xf32>
    %c33_i32 = arith.constant 33 : i32
    %108 = tpu.dynamic_rotate %59 by %c33_i32 dim 1 : vector<2x256xf32>, i32 -> vector<2x256xf32>
    %c9 = arith.constant 9 : index
    %c0_51 = arith.constant 0 : index
    %c0_52 = arith.constant 0 : index
    %109 = vector.load %arg3[%c9, %c0_51, %c0_52] : memref<49x2x256xf32, #tpu.memory_space<vmem>>, vector<1x2x256xf32>
    %110 = vector.shape_cast %109 : vector<1x2x256xf32> to vector<2x256xf32>
    %111 = arith.mulf %110, %108 : vector<2x256xf32>
    %112 = arith.addf %107, %111 : vector<2x256xf32>
    %c32_i32 = arith.constant 32 : i32
    %113 = tpu.dynamic_rotate %59 by %c32_i32 dim 1 : vector<2x256xf32>, i32 -> vector<2x256xf32>
    %c10 = arith.constant 10 : index
    %c0_53 = arith.constant 0 : index
    %c0_54 = arith.constant 0 : index
    %114 = vector.load %arg3[%c10, %c0_53, %c0_54] : memref<49x2x256xf32, #tpu.memory_space<vmem>>, vector<1x2x256xf32>
    %115 = vector.shape_cast %114 : vector<1x2x256xf32> to vector<2x256xf32>
    %116 = arith.mulf %115, %113 : vector<2x256xf32>
    %117 = arith.addf %112, %116 : vector<2x256xf32>
    %c31_i32 = arith.constant 31 : i32
    %118 = tpu.dynamic_rotate %59 by %c31_i32 dim 1 : vector<2x256xf32>, i32 -> vector<2x256xf32>
    %c11 = arith.constant 11 : index
    %c0_55 = arith.constant 0 : index
    %c0_56 = arith.constant 0 : index
    %119 = vector.load %arg3[%c11, %c0_55, %c0_56] : memref<49x2x256xf32, #tpu.memory_space<vmem>>, vector<1x2x256xf32>
    %120 = vector.shape_cast %119 : vector<1x2x256xf32> to vector<2x256xf32>
    %121 = arith.mulf %120, %118 : vector<2x256xf32>
    %122 = arith.addf %117, %121 : vector<2x256xf32>
    %c30_i32 = arith.constant 30 : i32
    %123 = tpu.dynamic_rotate %59 by %c30_i32 dim 1 : vector<2x256xf32>, i32 -> vector<2x256xf32>
    %c12 = arith.constant 12 : index
    %c0_57 = arith.constant 0 : index
    %c0_58 = arith.constant 0 : index
    %124 = vector.load %arg3[%c12, %c0_57, %c0_58] : memref<49x2x256xf32, #tpu.memory_space<vmem>>, vector<1x2x256xf32>
    %125 = vector.shape_cast %124 : vector<1x2x256xf32> to vector<2x256xf32>
    %126 = arith.mulf %125, %123 : vector<2x256xf32>
    %127 = arith.addf %122, %126 : vector<2x256xf32>
    %c29_i32 = arith.constant 29 : i32
    %128 = tpu.dynamic_rotate %59 by %c29_i32 dim 1 : vector<2x256xf32>, i32 -> vector<2x256xf32>
    %c13 = arith.constant 13 : index
    %c0_59 = arith.constant 0 : index
    %c0_60 = arith.constant 0 : index
    %129 = vector.load %arg3[%c13, %c0_59, %c0_60] : memref<49x2x256xf32, #tpu.memory_space<vmem>>, vector<1x2x256xf32>
    %130 = vector.shape_cast %129 : vector<1x2x256xf32> to vector<2x256xf32>
    %131 = arith.mulf %130, %128 : vector<2x256xf32>
    %132 = arith.addf %127, %131 : vector<2x256xf32>
    %c19_i32 = arith.constant 19 : i32
    %133 = tpu.dynamic_rotate %59 by %c19_i32 dim 1 : vector<2x256xf32>, i32 -> vector<2x256xf32>
    %c14 = arith.constant 14 : index
    %c0_61 = arith.constant 0 : index
    %c0_62 = arith.constant 0 : index
    %134 = vector.load %arg3[%c14, %c0_61, %c0_62] : memref<49x2x256xf32, #tpu.memory_space<vmem>>, vector<1x2x256xf32>
    %135 = vector.shape_cast %134 : vector<1x2x256xf32> to vector<2x256xf32>
    %136 = arith.mulf %135, %133 : vector<2x256xf32>
    %137 = arith.addf %132, %136 : vector<2x256xf32>
    %c18_i32 = arith.constant 18 : i32
    %138 = tpu.dynamic_rotate %59 by %c18_i32 dim 1 : vector<2x256xf32>, i32 -> vector<2x256xf32>
    %c15 = arith.constant 15 : index
    %c0_63 = arith.constant 0 : index
    %c0_64 = arith.constant 0 : index
    %139 = vector.load %arg3[%c15, %c0_63, %c0_64] : memref<49x2x256xf32, #tpu.memory_space<vmem>>, vector<1x2x256xf32>
    %140 = vector.shape_cast %139 : vector<1x2x256xf32> to vector<2x256xf32>
    %141 = arith.mulf %140, %138 : vector<2x256xf32>
    %142 = arith.addf %137, %141 : vector<2x256xf32>
    %c17_i32 = arith.constant 17 : i32
    %143 = tpu.dynamic_rotate %59 by %c17_i32 dim 1 : vector<2x256xf32>, i32 -> vector<2x256xf32>
    %c16 = arith.constant 16 : index
    %c0_65 = arith.constant 0 : index
    %c0_66 = arith.constant 0 : index
    %144 = vector.load %arg3[%c16, %c0_65, %c0_66] : memref<49x2x256xf32, #tpu.memory_space<vmem>>, vector<1x2x256xf32>
    %145 = vector.shape_cast %144 : vector<1x2x256xf32> to vector<2x256xf32>
    %146 = arith.mulf %145, %143 : vector<2x256xf32>
    %147 = arith.addf %142, %146 : vector<2x256xf32>
    %c16_i32 = arith.constant 16 : i32
    %148 = tpu.dynamic_rotate %59 by %c16_i32 dim 1 : vector<2x256xf32>, i32 -> vector<2x256xf32>
    %c17 = arith.constant 17 : index
    %c0_67 = arith.constant 0 : index
    %c0_68 = arith.constant 0 : index
    %149 = vector.load %arg3[%c17, %c0_67, %c0_68] : memref<49x2x256xf32, #tpu.memory_space<vmem>>, vector<1x2x256xf32>
    %150 = vector.shape_cast %149 : vector<1x2x256xf32> to vector<2x256xf32>
    %151 = arith.mulf %150, %148 : vector<2x256xf32>
    %152 = arith.addf %147, %151 : vector<2x256xf32>
    %c15_i32 = arith.constant 15 : i32
    %153 = tpu.dynamic_rotate %59 by %c15_i32 dim 1 : vector<2x256xf32>, i32 -> vector<2x256xf32>
    %c18 = arith.constant 18 : index
    %c0_69 = arith.constant 0 : index
    %c0_70 = arith.constant 0 : index
    %154 = vector.load %arg3[%c18, %c0_69, %c0_70] : memref<49x2x256xf32, #tpu.memory_space<vmem>>, vector<1x2x256xf32>
    %155 = vector.shape_cast %154 : vector<1x2x256xf32> to vector<2x256xf32>
    %156 = arith.mulf %155, %153 : vector<2x256xf32>
    %157 = arith.addf %152, %156 : vector<2x256xf32>
    %c14_i32 = arith.constant 14 : i32
    %158 = tpu.dynamic_rotate %59 by %c14_i32 dim 1 : vector<2x256xf32>, i32 -> vector<2x256xf32>
    %c19 = arith.constant 19 : index
    %c0_71 = arith.constant 0 : index
    %c0_72 = arith.constant 0 : index
    %159 = vector.load %arg3[%c19, %c0_71, %c0_72] : memref<49x2x256xf32, #tpu.memory_space<vmem>>, vector<1x2x256xf32>
    %160 = vector.shape_cast %159 : vector<1x2x256xf32> to vector<2x256xf32>
    %161 = arith.mulf %160, %158 : vector<2x256xf32>
    %162 = arith.addf %157, %161 : vector<2x256xf32>
    %c13_i32 = arith.constant 13 : i32
    %163 = tpu.dynamic_rotate %59 by %c13_i32 dim 1 : vector<2x256xf32>, i32 -> vector<2x256xf32>
    %c20 = arith.constant 20 : index
    %c0_73 = arith.constant 0 : index
    %c0_74 = arith.constant 0 : index
    %164 = vector.load %arg3[%c20, %c0_73, %c0_74] : memref<49x2x256xf32, #tpu.memory_space<vmem>>, vector<1x2x256xf32>
    %165 = vector.shape_cast %164 : vector<1x2x256xf32> to vector<2x256xf32>
    %166 = arith.mulf %165, %163 : vector<2x256xf32>
    %167 = arith.addf %162, %166 : vector<2x256xf32>
    %c3_i32 = arith.constant 3 : i32
    %168 = tpu.dynamic_rotate %59 by %c3_i32 dim 1 : vector<2x256xf32>, i32 -> vector<2x256xf32>
    %c21 = arith.constant 21 : index
    %c0_75 = arith.constant 0 : index
    %c0_76 = arith.constant 0 : index
    %169 = vector.load %arg3[%c21, %c0_75, %c0_76] : memref<49x2x256xf32, #tpu.memory_space<vmem>>, vector<1x2x256xf32>
    %170 = vector.shape_cast %169 : vector<1x2x256xf32> to vector<2x256xf32>
    %171 = arith.mulf %170, %168 : vector<2x256xf32>
    %172 = arith.addf %167, %171 : vector<2x256xf32>
    %c2_i32 = arith.constant 2 : i32
    %173 = tpu.dynamic_rotate %59 by %c2_i32 dim 1 : vector<2x256xf32>, i32 -> vector<2x256xf32>
    %c22 = arith.constant 22 : index
    %c0_77 = arith.constant 0 : index
    %c0_78 = arith.constant 0 : index
    %174 = vector.load %arg3[%c22, %c0_77, %c0_78] : memref<49x2x256xf32, #tpu.memory_space<vmem>>, vector<1x2x256xf32>
    %175 = vector.shape_cast %174 : vector<1x2x256xf32> to vector<2x256xf32>
    %176 = arith.mulf %175, %173 : vector<2x256xf32>
    %177 = arith.addf %172, %176 : vector<2x256xf32>
    %c1_i32 = arith.constant 1 : i32
    %178 = tpu.dynamic_rotate %59 by %c1_i32 dim 1 : vector<2x256xf32>, i32 -> vector<2x256xf32>
    %c23 = arith.constant 23 : index
    %c0_79 = arith.constant 0 : index
    %c0_80 = arith.constant 0 : index
    %179 = vector.load %arg3[%c23, %c0_79, %c0_80] : memref<49x2x256xf32, #tpu.memory_space<vmem>>, vector<1x2x256xf32>
    %180 = vector.shape_cast %179 : vector<1x2x256xf32> to vector<2x256xf32>
    %181 = arith.mulf %180, %178 : vector<2x256xf32>
    %182 = arith.addf %177, %181 : vector<2x256xf32>
    %c255_i32 = arith.constant 255 : i32
    %183 = tpu.dynamic_rotate %59 by %c255_i32 dim 1 : vector<2x256xf32>, i32 -> vector<2x256xf32>
    %c25 = arith.constant 25 : index
    %c0_81 = arith.constant 0 : index
    %c0_82 = arith.constant 0 : index
    %184 = vector.load %arg3[%c25, %c0_81, %c0_82] : memref<49x2x256xf32, #tpu.memory_space<vmem>>, vector<1x2x256xf32>
    %185 = vector.shape_cast %184 : vector<1x2x256xf32> to vector<2x256xf32>
    %186 = arith.mulf %185, %183 : vector<2x256xf32>
    %187 = arith.addf %182, %186 : vector<2x256xf32>
    %c254_i32 = arith.constant 254 : i32
    %188 = tpu.dynamic_rotate %59 by %c254_i32 dim 1 : vector<2x256xf32>, i32 -> vector<2x256xf32>
    %c26 = arith.constant 26 : index
    %c0_83 = arith.constant 0 : index
    %c0_84 = arith.constant 0 : index
    %189 = vector.load %arg3[%c26, %c0_83, %c0_84] : memref<49x2x256xf32, #tpu.memory_space<vmem>>, vector<1x2x256xf32>
    %190 = vector.shape_cast %189 : vector<1x2x256xf32> to vector<2x256xf32>
    %191 = arith.mulf %190, %188 : vector<2x256xf32>
    %192 = arith.addf %187, %191 : vector<2x256xf32>
    %c253_i32 = arith.constant 253 : i32
    %193 = tpu.dynamic_rotate %59 by %c253_i32 dim 1 : vector<2x256xf32>, i32 -> vector<2x256xf32>
    %c27 = arith.constant 27 : index
    %c0_85 = arith.constant 0 : index
    %c0_86 = arith.constant 0 : index
    %194 = vector.load %arg3[%c27, %c0_85, %c0_86] : memref<49x2x256xf32, #tpu.memory_space<vmem>>, vector<1x2x256xf32>
    %195 = vector.shape_cast %194 : vector<1x2x256xf32> to vector<2x256xf32>
    %196 = arith.mulf %195, %193 : vector<2x256xf32>
    %197 = arith.addf %192, %196 : vector<2x256xf32>
    %c243_i32 = arith.constant 243 : i32
    %198 = tpu.dynamic_rotate %59 by %c243_i32 dim 1 : vector<2x256xf32>, i32 -> vector<2x256xf32>
    %c28 = arith.constant 28 : index
    %c0_87 = arith.constant 0 : index
    %c0_88 = arith.constant 0 : index
    %199 = vector.load %arg3[%c28, %c0_87, %c0_88] : memref<49x2x256xf32, #tpu.memory_space<vmem>>, vector<1x2x256xf32>
    %200 = vector.shape_cast %199 : vector<1x2x256xf32> to vector<2x256xf32>
    %201 = arith.mulf %200, %198 : vector<2x256xf32>
    %202 = arith.addf %197, %201 : vector<2x256xf32>
    %c242_i32 = arith.constant 242 : i32
    %203 = tpu.dynamic_rotate %59 by %c242_i32 dim 1 : vector<2x256xf32>, i32 -> vector<2x256xf32>
    %c29 = arith.constant 29 : index
    %c0_89 = arith.constant 0 : index
    %c0_90 = arith.constant 0 : index
    %204 = vector.load %arg3[%c29, %c0_89, %c0_90] : memref<49x2x256xf32, #tpu.memory_space<vmem>>, vector<1x2x256xf32>
    %205 = vector.shape_cast %204 : vector<1x2x256xf32> to vector<2x256xf32>
    %206 = arith.mulf %205, %203 : vector<2x256xf32>
    %207 = arith.addf %202, %206 : vector<2x256xf32>
    %c241_i32 = arith.constant 241 : i32
    %208 = tpu.dynamic_rotate %59 by %c241_i32 dim 1 : vector<2x256xf32>, i32 -> vector<2x256xf32>
    %c30 = arith.constant 30 : index
    %c0_91 = arith.constant 0 : index
    %c0_92 = arith.constant 0 : index
    %209 = vector.load %arg3[%c30, %c0_91, %c0_92] : memref<49x2x256xf32, #tpu.memory_space<vmem>>, vector<1x2x256xf32>
    %210 = vector.shape_cast %209 : vector<1x2x256xf32> to vector<2x256xf32>
    %211 = arith.mulf %210, %208 : vector<2x256xf32>
    %212 = arith.addf %207, %211 : vector<2x256xf32>
    %c240_i32 = arith.constant 240 : i32
    %213 = tpu.dynamic_rotate %59 by %c240_i32 dim 1 : vector<2x256xf32>, i32 -> vector<2x256xf32>
    %c31 = arith.constant 31 : index
    %c0_93 = arith.constant 0 : index
    %c0_94 = arith.constant 0 : index
    %214 = vector.load %arg3[%c31, %c0_93, %c0_94] : memref<49x2x256xf32, #tpu.memory_space<vmem>>, vector<1x2x256xf32>
    %215 = vector.shape_cast %214 : vector<1x2x256xf32> to vector<2x256xf32>
    %216 = arith.mulf %215, %213 : vector<2x256xf32>
    %217 = arith.addf %212, %216 : vector<2x256xf32>
    %c239_i32 = arith.constant 239 : i32
    %218 = tpu.dynamic_rotate %59 by %c239_i32 dim 1 : vector<2x256xf32>, i32 -> vector<2x256xf32>
    %c32 = arith.constant 32 : index
    %c0_95 = arith.constant 0 : index
    %c0_96 = arith.constant 0 : index
    %219 = vector.load %arg3[%c32, %c0_95, %c0_96] : memref<49x2x256xf32, #tpu.memory_space<vmem>>, vector<1x2x256xf32>
    %220 = vector.shape_cast %219 : vector<1x2x256xf32> to vector<2x256xf32>
    %221 = arith.mulf %220, %218 : vector<2x256xf32>
    %222 = arith.addf %217, %221 : vector<2x256xf32>
    %c238_i32 = arith.constant 238 : i32
    %223 = tpu.dynamic_rotate %59 by %c238_i32 dim 1 : vector<2x256xf32>, i32 -> vector<2x256xf32>
    %c33 = arith.constant 33 : index
    %c0_97 = arith.constant 0 : index
    %c0_98 = arith.constant 0 : index
    %224 = vector.load %arg3[%c33, %c0_97, %c0_98] : memref<49x2x256xf32, #tpu.memory_space<vmem>>, vector<1x2x256xf32>
    %225 = vector.shape_cast %224 : vector<1x2x256xf32> to vector<2x256xf32>
    %226 = arith.mulf %225, %223 : vector<2x256xf32>
    %227 = arith.addf %222, %226 : vector<2x256xf32>
    %c237_i32 = arith.constant 237 : i32
    %228 = tpu.dynamic_rotate %59 by %c237_i32 dim 1 : vector<2x256xf32>, i32 -> vector<2x256xf32>
    %c34 = arith.constant 34 : index
    %c0_99 = arith.constant 0 : index
    %c0_100 = arith.constant 0 : index
    %229 = vector.load %arg3[%c34, %c0_99, %c0_100] : memref<49x2x256xf32, #tpu.memory_space<vmem>>, vector<1x2x256xf32>
    %230 = vector.shape_cast %229 : vector<1x2x256xf32> to vector<2x256xf32>
    %231 = arith.mulf %230, %228 : vector<2x256xf32>
    %232 = arith.addf %227, %231 : vector<2x256xf32>
    %c227_i32 = arith.constant 227 : i32
    %233 = tpu.dynamic_rotate %59 by %c227_i32 dim 1 : vector<2x256xf32>, i32 -> vector<2x256xf32>
    %c35 = arith.constant 35 : index
    %c0_101 = arith.constant 0 : index
    %c0_102 = arith.constant 0 : index
    %234 = vector.load %arg3[%c35, %c0_101, %c0_102] : memref<49x2x256xf32, #tpu.memory_space<vmem>>, vector<1x2x256xf32>
    %235 = vector.shape_cast %234 : vector<1x2x256xf32> to vector<2x256xf32>
    %236 = arith.mulf %235, %233 : vector<2x256xf32>
    %237 = arith.addf %232, %236 : vector<2x256xf32>
    %c226_i32 = arith.constant 226 : i32
    %238 = tpu.dynamic_rotate %59 by %c226_i32 dim 1 : vector<2x256xf32>, i32 -> vector<2x256xf32>
    %c36 = arith.constant 36 : index
    %c0_103 = arith.constant 0 : index
    %c0_104 = arith.constant 0 : index
    %239 = vector.load %arg3[%c36, %c0_103, %c0_104] : memref<49x2x256xf32, #tpu.memory_space<vmem>>, vector<1x2x256xf32>
    %240 = vector.shape_cast %239 : vector<1x2x256xf32> to vector<2x256xf32>
    %241 = arith.mulf %240, %238 : vector<2x256xf32>
    %242 = arith.addf %237, %241 : vector<2x256xf32>
    %c225_i32 = arith.constant 225 : i32
    %243 = tpu.dynamic_rotate %59 by %c225_i32 dim 1 : vector<2x256xf32>, i32 -> vector<2x256xf32>
    %c37 = arith.constant 37 : index
    %c0_105 = arith.constant 0 : index
    %c0_106 = arith.constant 0 : index
    %244 = vector.load %arg3[%c37, %c0_105, %c0_106] : memref<49x2x256xf32, #tpu.memory_space<vmem>>, vector<1x2x256xf32>
    %245 = vector.shape_cast %244 : vector<1x2x256xf32> to vector<2x256xf32>
    %246 = arith.mulf %245, %243 : vector<2x256xf32>
    %247 = arith.addf %242, %246 : vector<2x256xf32>
    %c224_i32 = arith.constant 224 : i32
    %248 = tpu.dynamic_rotate %59 by %c224_i32 dim 1 : vector<2x256xf32>, i32 -> vector<2x256xf32>
    %c38 = arith.constant 38 : index
    %c0_107 = arith.constant 0 : index
    %c0_108 = arith.constant 0 : index
    %249 = vector.load %arg3[%c38, %c0_107, %c0_108] : memref<49x2x256xf32, #tpu.memory_space<vmem>>, vector<1x2x256xf32>
    %250 = vector.shape_cast %249 : vector<1x2x256xf32> to vector<2x256xf32>
    %251 = arith.mulf %250, %248 : vector<2x256xf32>
    %252 = arith.addf %247, %251 : vector<2x256xf32>
    %c223_i32 = arith.constant 223 : i32
    %253 = tpu.dynamic_rotate %59 by %c223_i32 dim 1 : vector<2x256xf32>, i32 -> vector<2x256xf32>
    %c39 = arith.constant 39 : index
    %c0_109 = arith.constant 0 : index
    %c0_110 = arith.constant 0 : index
    %254 = vector.load %arg3[%c39, %c0_109, %c0_110] : memref<49x2x256xf32, #tpu.memory_space<vmem>>, vector<1x2x256xf32>
    %255 = vector.shape_cast %254 : vector<1x2x256xf32> to vector<2x256xf32>
    %256 = arith.mulf %255, %253 : vector<2x256xf32>
    %257 = arith.addf %252, %256 : vector<2x256xf32>
    %c222_i32 = arith.constant 222 : i32
    %258 = tpu.dynamic_rotate %59 by %c222_i32 dim 1 : vector<2x256xf32>, i32 -> vector<2x256xf32>
    %c40 = arith.constant 40 : index
    %c0_111 = arith.constant 0 : index
    %c0_112 = arith.constant 0 : index
    %259 = vector.load %arg3[%c40, %c0_111, %c0_112] : memref<49x2x256xf32, #tpu.memory_space<vmem>>, vector<1x2x256xf32>
    %260 = vector.shape_cast %259 : vector<1x2x256xf32> to vector<2x256xf32>
    %261 = arith.mulf %260, %258 : vector<2x256xf32>
    %262 = arith.addf %257, %261 : vector<2x256xf32>
    %c221_i32 = arith.constant 221 : i32
    %263 = tpu.dynamic_rotate %59 by %c221_i32 dim 1 : vector<2x256xf32>, i32 -> vector<2x256xf32>
    %c41 = arith.constant 41 : index
    %c0_113 = arith.constant 0 : index
    %c0_114 = arith.constant 0 : index
    %264 = vector.load %arg3[%c41, %c0_113, %c0_114] : memref<49x2x256xf32, #tpu.memory_space<vmem>>, vector<1x2x256xf32>
    %265 = vector.shape_cast %264 : vector<1x2x256xf32> to vector<2x256xf32>
    %266 = arith.mulf %265, %263 : vector<2x256xf32>
    %267 = arith.addf %262, %266 : vector<2x256xf32>
    %c211_i32 = arith.constant 211 : i32
    %268 = tpu.dynamic_rotate %59 by %c211_i32 dim 1 : vector<2x256xf32>, i32 -> vector<2x256xf32>
    %c42 = arith.constant 42 : index
    %c0_115 = arith.constant 0 : index
    %c0_116 = arith.constant 0 : index
    %269 = vector.load %arg3[%c42, %c0_115, %c0_116] : memref<49x2x256xf32, #tpu.memory_space<vmem>>, vector<1x2x256xf32>
    %270 = vector.shape_cast %269 : vector<1x2x256xf32> to vector<2x256xf32>
    %271 = arith.mulf %270, %268 : vector<2x256xf32>
    %272 = arith.addf %267, %271 : vector<2x256xf32>
    %c210_i32 = arith.constant 210 : i32
    %273 = tpu.dynamic_rotate %59 by %c210_i32 dim 1 : vector<2x256xf32>, i32 -> vector<2x256xf32>
    %c43 = arith.constant 43 : index
    %c0_117 = arith.constant 0 : index
    %c0_118 = arith.constant 0 : index
    %274 = vector.load %arg3[%c43, %c0_117, %c0_118] : memref<49x2x256xf32, #tpu.memory_space<vmem>>, vector<1x2x256xf32>
    %275 = vector.shape_cast %274 : vector<1x2x256xf32> to vector<2x256xf32>
    %276 = arith.mulf %275, %273 : vector<2x256xf32>
    %277 = arith.addf %272, %276 : vector<2x256xf32>
    %c209_i32 = arith.constant 209 : i32
    %278 = tpu.dynamic_rotate %59 by %c209_i32 dim 1 : vector<2x256xf32>, i32 -> vector<2x256xf32>
    %c44 = arith.constant 44 : index
    %c0_119 = arith.constant 0 : index
    %c0_120 = arith.constant 0 : index
    %279 = vector.load %arg3[%c44, %c0_119, %c0_120] : memref<49x2x256xf32, #tpu.memory_space<vmem>>, vector<1x2x256xf32>
    %280 = vector.shape_cast %279 : vector<1x2x256xf32> to vector<2x256xf32>
    %281 = arith.mulf %280, %278 : vector<2x256xf32>
    %282 = arith.addf %277, %281 : vector<2x256xf32>
    %c208_i32 = arith.constant 208 : i32
    %283 = tpu.dynamic_rotate %59 by %c208_i32 dim 1 : vector<2x256xf32>, i32 -> vector<2x256xf32>
    %c45 = arith.constant 45 : index
    %c0_121 = arith.constant 0 : index
    %c0_122 = arith.constant 0 : index
    %284 = vector.load %arg3[%c45, %c0_121, %c0_122] : memref<49x2x256xf32, #tpu.memory_space<vmem>>, vector<1x2x256xf32>
    %285 = vector.shape_cast %284 : vector<1x2x256xf32> to vector<2x256xf32>
    %286 = arith.mulf %285, %283 : vector<2x256xf32>
    %287 = arith.addf %282, %286 : vector<2x256xf32>
    %c207_i32 = arith.constant 207 : i32
    %288 = tpu.dynamic_rotate %59 by %c207_i32 dim 1 : vector<2x256xf32>, i32 -> vector<2x256xf32>
    %c46 = arith.constant 46 : index
    %c0_123 = arith.constant 0 : index
    %c0_124 = arith.constant 0 : index
    %289 = vector.load %arg3[%c46, %c0_123, %c0_124] : memref<49x2x256xf32, #tpu.memory_space<vmem>>, vector<1x2x256xf32>
    %290 = vector.shape_cast %289 : vector<1x2x256xf32> to vector<2x256xf32>
    %291 = arith.mulf %290, %288 : vector<2x256xf32>
    %292 = arith.addf %287, %291 : vector<2x256xf32>
    %c206_i32 = arith.constant 206 : i32
    %293 = tpu.dynamic_rotate %59 by %c206_i32 dim 1 : vector<2x256xf32>, i32 -> vector<2x256xf32>
    %c47 = arith.constant 47 : index
    %c0_125 = arith.constant 0 : index
    %c0_126 = arith.constant 0 : index
    %294 = vector.load %arg3[%c47, %c0_125, %c0_126] : memref<49x2x256xf32, #tpu.memory_space<vmem>>, vector<1x2x256xf32>
    %295 = vector.shape_cast %294 : vector<1x2x256xf32> to vector<2x256xf32>
    %296 = arith.mulf %295, %293 : vector<2x256xf32>
    %297 = arith.addf %292, %296 : vector<2x256xf32>
    %c205_i32 = arith.constant 205 : i32
    %298 = tpu.dynamic_rotate %59 by %c205_i32 dim 1 : vector<2x256xf32>, i32 -> vector<2x256xf32>
    %c48 = arith.constant 48 : index
    %c0_127 = arith.constant 0 : index
    %c0_128 = arith.constant 0 : index
    %299 = vector.load %arg3[%c48, %c0_127, %c0_128] : memref<49x2x256xf32, #tpu.memory_space<vmem>>, vector<1x2x256xf32>
    %300 = vector.shape_cast %299 : vector<1x2x256xf32> to vector<2x256xf32>
    %301 = arith.mulf %300, %298 : vector<2x256xf32>
    %302 = arith.addf %297, %301 : vector<2x256xf32>
    %303 = vector.extract_strided_slice %302 {offsets = [0, 0], sizes = [1, 256], strides = [1, 1]} : vector<2x256xf32> to vector<1x256xf32>
    %304 = vector.extract_strided_slice %302 {offsets = [1, 0], sizes = [1, 256], strides = [1, 1]} : vector<2x256xf32> to vector<1x256xf32>
    %305 = arith.addf %303, %304 : vector<1x256xf32>
    %306 = arith.negf %305 : vector<1x256xf32>
    %307 = math.exp %306 : vector<1x256xf32>
    %cst_129 = arith.constant 1.000000e+00 : f32
    %308 = vector.broadcast %cst_129 : f32 to vector<1x256xf32>
    %309 = arith.addf %308, %307 : vector<1x256xf32>
    %310 = arith.divf %308, %309 : vector<1x256xf32>
    %c0_130 = arith.constant 0 : index
    %c0_131 = arith.constant 0 : index
    %311 = vector.load %arg6[%c0_130, %c0_131] : memref<32x1xf32, #tpu.memory_space<vmem>>, vector<32x1xf32>
    %c0_132 = arith.constant 0 : index
    %c0_133 = arith.constant 0 : index
    %312 = vector.load %arg1[%c0_132, %c0_133] : memref<32x256xf32, #tpu.memory_space<vmem>>, vector<32x256xf32>
    %313 = vector.broadcast %311 : vector<32x1xf32> to vector<32x256xf32>
    %314 = arith.mulf %312, %313 : vector<32x256xf32>
    %315 = vector.broadcast %310 : vector<1x256xf32> to vector<32x256xf32>
    %316 = arith.mulf %314, %315 : vector<32x256xf32>
    %c0_134 = arith.constant 0 : index
    %c0_135 = arith.constant 0 : index
    %317 = vector.load %arg4[%c0_134, %c0_135] : memref<32x256xf32, #tpu.memory_space<vmem>>, vector<32x256xf32>
    tpu.vector_store %arg4[%c0_134, %c0_135], %316 {strides = array<i32>} : memref<32x256xf32, #tpu.memory_space<vmem>>, vector<32x256xf32>,
    return
  }
  func.func @transform_0(%arg0: i32) -> (i32, i32) {
    %c0_i32 = arith.constant 0 : i32
    %c0_i32_0 = arith.constant 0 : i32
    return %arg0, %c0_i32 : i32, i32
  }
  func.func @transform_1(%arg0: i32) -> (i32, i32) {
    %c0_i32 = arith.constant 0 : i32
    %c0_i32_0 = arith.constant 0 : i32
    %c0_i32_1 = arith.constant 0 : i32
    return %c0_i32, %c0_i32_0 : i32, i32
  }
  func.func @transform_2(%arg0: i32) -> (i32, i32, i32) {
    %c0_i32 = arith.constant 0 : i32
    %c0_i32_0 = arith.constant 0 : i32
    %c0_i32_1 = arith.constant 0 : i32
    %c0_i32_2 = arith.constant 0 : i32
    return %c0_i32, %c0_i32_0, %c0_i32_1 : i32, i32, i32
  }
  func.func @transform_3(%arg0: i32) -> (i32, i32) {
    %c0_i32 = arith.constant 0 : i32
    %c0_i32_0 = arith.constant 0 : i32
    return %arg0, %c0_i32 : i32, i32
  }
}

</mosaic_0001>

<llo_original>
// kernel: tpu_custom_call.1
$region0: #{tpu_custom_call.1}
  #allocation0 [shape = 'u32[]', space=smem, size = 0x4, offset = 0x4, fixed_abs, tag = 'smem constant byte address 0x4 - core index']
  #allocation1 [shape = 'u32[144,128]{1,0:T(1,128)}', space=vmem, size = 0x12000, scoped, tag = 'internal scratch']
  #allocation2 [shape = 'f32[2,256]{1,0:T(2,128)}', space=vmem, size = 0x800, scoped, tag = 'scratch operand']
  #allocation3 [shape = 'f32[32,1]{1,0:T(8,128)}', space=vmem, size = 0x4000, scoped, tag = 'scratch operand']
  %s0 = inlined_call_operand.hbm [shape: f32[64,256], index: 0, kind: input, shape index: {}]
  %s1 = inlined_call_operand.vmem [shape: f32[32,4], index: 1, kind: input, shape index: {}]
  %s2 = inlined_call_operand.hbm [shape: f32[49,2,256], index: 2, kind: input, shape index: {}]
  %s3 = inlined_call_operand.hbm [shape: f32[64,256], index: 3, kind: output, shape index: {}]
  %s4 = sld [smem:[#allocation0]]
  $region53: #{tpu_custom_call.1} parent=0
    _
  %s6 = ssub.s32 1, %s4
  %s7 = scalar_select 0, %s6, %s4
  $region1: #{tpu_custom_call.1} parent=0
    #allocation4 [shape = 'u8[65536]{0}', space=vmem, size = 0x10000, scoped, tag = 'input window, operand 0']
    #allocation5 [shape = 's32[2]{0}', space=sflag, size = 0x8, scoped, tag = 'scoped memory for tpu_custom_call.1']
    #allocation6 [shape = 's32[2]{0}', space=sflag, size = 0x8, scoped, tag = 'scoped memory for tpu_custom_call.1']
    #allocation7 [shape = 'u8[100352]{0}', space=vmem, size = 0x18800, scoped, tag = 'input window, operand 2, single buffered']
    #allocation8 [shape = 's32[1]{0}', space=sflag, size = 0x4, scoped, tag = 'scoped memory for tpu_custom_call.1']
    #allocation9 [shape = 'u8[65536]{0}', space=vmem, size = 0x10000, scoped, tag = 'output window, operand 0']
    %8 = vsyncpa [#allocation5], 0
    %s9 = scalar_lea.sflag [#allocation5], 1
    %10 = vsyncpa %s9, 0
    %11 = vsyncpa [#allocation8], 0
    %12 = vsyncpa [#allocation6], 0
    %s13 = scalar_lea.sflag [#allocation6], 1
    %14 = vsyncpa %s13, 0
    loop: start=0, step=1, limit=4
    $region2: #{tpu_custom_call.1} parent=1 // loop_pre_header
      _
    $region3: #{tpu_custom_call.1} parent=1 // loop_header
      %s16 = sphi 0, %s20
      %p17 = scmp.ge.s32.totalorder %s16, 4
      %s26 = sphi 0, %s28
      %s29 = sphi 0, %s26
      %s30 = sphi 0, %s29
      %s46 = sphi 0, %s30
      %s50 = sphi 0, %s50
      %s52 = sphi 0, %s50
      %s53 = sphi 0, %s52
      %s67 = sphi 0, %s53
      %s71 = sphi 0, %s71
      %s73 = sphi 0, %s71
      %s74 = sphi 0, %s73
      %s88 = sphi 0, %s74
      %s94 = sphi 0, %s96
      %s97 = sphi 0, %s94
      %s98 = sphi 0, %s97
      %s114 = sphi 0, %s98
    $region4: #{tpu_custom_call.1} parent=1 // loop_header_branch
      %19 = sbr.rel (%p17) target = $region8
    $region5: #{tpu_custom_call.1} parent=1 // loop_body
      %s21 = ssub.s32 %s16, 1
      %s22 = ssub.s32 %s16, 2
      %s23 = sadd.s32 %s16, 1
      %s24 = ssub.s32 %s16, %s23
      %p25 = scmp.eq.s32.totalorder %s24, 0
      %s27 = sadd.s32 %s26, 1
      %s28 = scalar_select %p25, %s26, %s27
      %p31 = pneg %p25
      %p32 = scmp.eq.s32.totalorder %s16, 1
      %p33 = por %p31, %p32
      %p34 = scmp.ne.s32.totalorder %s26, %s29
      %p35 = scmp.eq.s32.totalorder %s16, 0
      %p36 = por %p34, %p35
      %p37 = scmp.ne.s32.totalorder %s26, %s29
      %p38 = scmp.eq.s32.totalorder %s21, 1
      %p39 = por %p37, %p38
      %p40 = scmp.ne.s32.totalorder %s29, %s30
      %p41 = scmp.eq.s32.totalorder %s21, 0
      %p42 = por %p40, %p41
      %p43 = scmp.ne.s32.totalorder %s29, %s30
      %p44 = scmp.eq.s32.totalorder %s22, 1
      %p45 = por %p43, %p44
      %p47 = scmp.ne.s32.totalorder %s30, %s46
      %p48 = scmp.eq.s32.totalorder %s22, 0
      %p49 = por %p47, %p48
      %s51 = sadd.s32 %s50, 1
      %p54 = scmp.eq.s32.totalorder %s16, 1
      %p55 = scmp.ne.s32.totalorder %s50, %s52
      %p56 = scmp.eq.s32.totalorder %s16, 0
      %p57 = por %p55, %p56
      %p58 = scmp.ne.s32.totalorder %s50, %s52
      %p59 = scmp.eq.s32.totalorder %s21, 1
      %p60 = por %p58, %p59
      %p61 = scmp.ne.s32.totalorder %s52, %s53
      %p62 = scmp.eq.s32.totalorder %s21, 0
      %p63 = por %p61, %p62
      %p64 = scmp.ne.s32.totalorder %s52, %s53
      %p65 = scmp.eq.s32.totalorder %s22, 1
      %p66 = por %p64, %p65
      %p68 = scmp.ne.s32.totalorder %s53, %s67
      %p69 = scmp.eq.s32.totalorder %s22, 0
      %p70 = por %p68, %p69
      %s72 = sadd.s32 %s71, 1
      %p75 = scmp.eq.s32.totalorder %s16, 1
      %p76 = scmp.ne.s32.totalorder %s71, %s73
      %p77 = scmp.eq.s32.totalorder %s16, 0
      %p78 = por %p76, %p77
      %p79 = scmp.ne.s32.totalorder %s71, %s73
      %p80 = scmp.eq.s32.totalorder %s21, 1
      %p81 = por %p79, %p80
      %p82 = scmp.ne.s32.totalorder %s73, %s74
      %p83 = scmp.eq.s32.totalorder %s21, 0
      %p84 = por %p82, %p83
      %p85 = scmp.ne.s32.totalorder %s73, %s74
      %p86 = scmp.eq.s32.totalorder %s22, 1
      %p87 = por %p85, %p86
      %p89 = scmp.ne.s32.totalorder %s74, %s88
      %p90 = scmp.eq.s32.totalorder %s22, 0
      %p91 = por %p89, %p90
      %s92 = ssub.s32 %s16, %s23
      %p93 = scmp.eq.s32.totalorder %s92, 0
      %s95 = sadd.s32 %s94, 1
      %s96 = scalar_select %p93, %s94, %s95
      %p99 = pneg %p93
      %p100 = scmp.eq.s32.totalorder %s16, 1
      %p101 = por %p99, %p100
      %p102 = scmp.ne.s32.totalorder %s94, %s97
      %p103 = scmp.eq.s32.totalorder %s16, 0
      %p104 = por %p102, %p103
      %p105 = scmp.ne.s32.totalorder %s94, %s97
      %p106 = scmp.eq.s32.totalorder %s21, 1
      %p107 = por %p105, %p106
      %p108 = scmp.ne.s32.totalorder %s97, %s98
      %p109 = scmp.eq.s32.totalorder %s21, 0
      %p110 = por %p108, %p109
      %p111 = scmp.ne.s32.totalorder %s97, %s98
      %p112 = scmp.eq.s32.totalorder %s22, 1
      %p113 = por %p111, %p112
      %p115 = scmp.ne.s32.totalorder %s98, %s114
      %p116 = scmp.eq.s32.totalorder %s22, 0
      %p117 = por %p115, %p116
      %p118 = scmp.le.s32.totalorder 1, %s16
      %p119 = scmp.lt.s32.totalorder %s16, 3
      %p120 = pnand %p118, %p119
      %p121 = pneg %p120
      // Predicated region
      $region9: #{tpu_custom_call.1} parent=5 // pred_check
        _
      $region10: #{tpu_custom_call.1} parent=5 // pred_check_branch
        %123 = sbr.rel (%p120) target = $region12
      $region11: #{tpu_custom_call.1} parent=5 // pred_region
        %s124 = ssub.s32 %s16, 1
        // Predicated region
        $region13: #{tpu_custom_call.1} parent=11 // pred_check
          %p125 = pneg %p63
        $region14: #{tpu_custom_call.1} parent=11 // pred_check_branch
          %127 = sbr.rel (%p125) target = $region16
        $region15: #{tpu_custom_call.1} parent=11 // pred_region
          _
        $region16: #{tpu_custom_call.1} parent=11 // pred_fallthru
          _
        // Predicated region
        $region17: #{tpu_custom_call.1} parent=11 // pred_check
          %p128 = pneg %p84
        $region18: #{tpu_custom_call.1} parent=11 // pred_check_branch
          %130 = sbr.rel (%p128) target = $region20
        $region19: #{tpu_custom_call.1} parent=11 // pred_region
          %s132 = ssub.s32 3136, 3136
          %133 = vsyncadd [#allocation8], %s132
          %s134 = sshll.u32 [#allocation7], 4
          %s135 = int_to_ptr.vmem [resolvable:$true] %s134
          %140 = dma.hbm_to_vmem [thread:$0]  %s2, 3136, %s135, [#allocation8], 64, 64, 4
        $region20: #{tpu_custom_call.1} parent=11 // pred_fallthru
          _
      $region12: #{tpu_custom_call.1} parent=5 // pred_fallthru
        _
      %p141 = scmp.lt.s32.totalorder %s16, 2
      // Predicated region
      $region21: #{tpu_custom_call.1} parent=5 // pred_check
        %p142 = pneg %p141
      $region22: #{tpu_custom_call.1} parent=5 // pred_check_branch
        %144 = sbr.rel (%p142) target = $region24
      $region23: #{tpu_custom_call.1} parent=5 // pred_region
        // Predicated region
        $region25: #{tpu_custom_call.1} parent=23 // pred_check
          %p145 = pneg %p36
        $region26: #{tpu_custom_call.1} parent=23 // pred_check_branch
          %147 = sbr.rel (%p145) target = $region28
        $region27: #{tpu_custom_call.1} parent=23 // pred_region
          %s148 = sand.u32 %s26, 1
          %s149 = scalar_lea.sflag [#allocation5], %s148
          %s150 = sand.u32 %s26, 1
          %s151 = smul.addr %s150, 64
          %s152 = scalar_lea.vmem [#allocation4], %s151
          %s153 = smul.u32 4, %s16
          %s155 = ssub.s32 1024, 1024
          %156 = vsyncadd %s149, %s155
          %s157 = smul.addr %s153, 2
          %s158 = smul.addr %s157, 128
          %s159 = scalar_lea.hbm %s0, %s158
          %s160 = sshll.u32 %s152, 4
          %s161 = int_to_ptr.vmem [resolvable:$true] %s160
          %166 = dma.hbm_to_vmem [thread:$0]  %s159, 1024, %s161, %s149, 256, 256, 16
        $region28: #{tpu_custom_call.1} parent=23 // pred_fallthru
          _
      $region24: #{tpu_custom_call.1} parent=5 // pred_fallthru
        _
      %p167 = scmp.le.s32.totalorder 1, %s16
      %p168 = scmp.lt.s32.totalorder %s16, 3
      %p169 = pnand %p167, %p168
      %p170 = pneg %p169
      // Predicated region
      $region29: #{tpu_custom_call.1} parent=5 // pred_check
        _
      $region30: #{tpu_custom_call.1} parent=5 // pred_check_branch
        %172 = sbr.rel (%p169) target = $region32
      $region31: #{tpu_custom_call.1} parent=5 // pred_region
        %s173 = ssub.s32 %s16, 1
        %s174 = sand.u32 %s29, 1
        %s175 = scalar_lea.sflag [#allocation5], %s174
        %s176 = sand.u32 %s29, 1
        %s177 = smul.addr %s176, 64
        %s178 = scalar_lea.vmem [#allocation4], %s177
        // Predicated region
        $region33: #{tpu_custom_call.1} parent=31 // pred_check
          %p179 = pneg %p42
        $region34: #{tpu_custom_call.1} parent=31 // pred_check_branch
          %181 = sbr.rel (%p179) target = $region36
        $region35: #{tpu_custom_call.1} parent=31 // pred_region
          %182 = dma.done %s175, 1024
        $region36: #{tpu_custom_call.1} parent=31 // pred_fallthru
          _
        // Predicated region
        $region37: #{tpu_custom_call.1} parent=31 // pred_check
          %p183 = pneg %p84
        $region38: #{tpu_custom_call.1} parent=31 // pred_check_branch
          %185 = sbr.rel (%p183) target = $region40
        $region39: #{tpu_custom_call.1} parent=31 // pred_region
          %186 = dma.done [#allocation8], 3136
        $region40: #{tpu_custom_call.1} parent=31 // pred_fallthru
          _
        %s187 = sand.u32 %s29, 1
        %s188 = scalar_lea.sflag [#allocation5], %s187
        %s189 = sand.u32 %s29, 1
        %s190 = smul.addr %s189, 64
        %s191 = scalar_lea.vmem [#allocation4], %s190
        %p192 = pneg %p42
        %p193 = pneg %p39
        %p194 = pneg %p63
        %p195 = pneg %p60
        %p196 = pneg %p84
        %p197 = pneg %p81
        %p198 = pneg %p110
        %p199 = pneg %p107
        %s200 = sand.u32 %s97, 1
        %s201 = scalar_lea.sflag [#allocation6], %s200
        %s202 = sand.u32 %s97, 1
        %s203 = smul.addr %s202, 64
        %s204 = scalar_lea.vmem [#allocation9], %s203
        %s205 = smul.u32 4, %s21
        %s206 = smul.u32 4, %s21
        %v207 = vld [vmem:[%s1] sm:$0xff]
        %v208 = vld [vmem:[%s1 + $0x8] sm:$0xff]
        %v209 = vld [vmem:[%s1 + $0x10] sm:$0xff]
        %v210 = vld [vmem:[%s1 + $0x18] sm:$0xff]
        %v211 = vld [vmem:[%s178] sm:$0xff]
        %v212 = vld [vmem:[%s178 + $0x8] sm:$0xff]
        %v213 = vld [vmem:[%s178 + $0x10] sm:$0xff]
        %v214 = vld [vmem:[%s178 + $0x18] sm:$0xff]
        %v215 = vld [vmem:[%s178 + $0x20] sm:$0xff]
        %v216 = vld [vmem:[%s178 + $0x28] sm:$0xff]
        %v217 = vld [vmem:[%s178 + $0x30] sm:$0xff]
        %v218 = vld [vmem:[%s178 + $0x38] sm:$0xff]
        %v219 = vadd.f32 %v211, %v212
        %220 = vadd.xlane.f32.xlu0 %v219
        %v221 = vpop.xlane.xlu0 %220
        %v222 = vadd.f32 %v213, %v214
        %223 = vadd.xlane.f32.xlu0 %v222
        %v224 = vpop.xlane.xlu0 %223
        %v225 = vadd.f32 %v215, %v216
        %226 = vadd.xlane.f32.xlu0 %v225
        %v227 = vpop.xlane.xlu0 %226
        %v228 = vadd.f32 %v217, %v218
        %229 = vadd.xlane.f32.xlu0 %v228
        %v230 = vpop.xlane.xlu0 %229
        %v231 = vmul.f32 %v221, 0.00390625
        %v232 = vmul.f32 %v224, 0.00390625
        %v233 = vmul.f32 %v227, 0.00390625
        %v234 = vmul.f32 %v230, 0.00390625
        %v235 = vmax.f32 %v211, %v212
        %236 = vmax.xlane.f32.xlu0 %v235
        %v237 = vpop.xlane.xlu0 %236
        %v238 = vmax.f32 %v213, %v214
        %239 = vmax.xlane.f32.xlu0 %v238
        %v240 = vpop.xlane.xlu0 %239
        %v241 = vmax.f32 %v215, %v216
        %242 = vmax.xlane.f32.xlu0 %v241
        %v243 = vpop.xlane.xlu0 %242
        %v244 = vmax.f32 %v217, %v218
        %245 = vmax.xlane.f32.xlu0 %v244
        %v246 = vpop.xlane.xlu0 %245
        %v247 = vmul.f32 %v231, %v207
        %v248 = vmul.f32 %v232, %v208
        %v249 = vmul.f32 %v233, %v209
        %v250 = vmul.f32 %v234, %v210
        %vm251 = vcmask 7168
        %v252 = vsel %vm251, %v247, 0.0
        %v253 = vsel %vm251, %v248, 0.0
        %v254 = vadd.f32 %v252, %v253
        %v255 = vsel %vm251, %v249, 0.0
        %v256 = vadd.f32 %v254, %v255
        %v257 = vsel %vm251, %v250, 0.0
        %v258 = vadd.f32 %v256, %v257
        %v259 = vrot.slane %v258, 4
        %v260 = vadd.f32 %v258, %v259
        %v261 = vrot.slane %v260, 2
        %v262 = vadd.f32 %v260, %v261
        %v263 = vrot.slane %v262, 1
        %v264 = vadd.f32 %v262, %v263
        %v265 = vmax.f32 %v264, 0.0
        %v266 = vmul.f32 %v237, %v207
        %v267 = vmul.f32 %v240, %v208
        %v268 = vmul.f32 %v243, %v209
        %v269 = vmul.f32 %v246, %v210
        %v270 = vsel %vm251, %v266, 0.0
        %v271 = vsel %vm251, %v267, 0.0
        %v272 = vadd.f32 %v270, %v271
        %v273 = vsel %vm251, %v268, 0.0
        %v274 = vadd.f32 %v272, %v273
        %v275 = vsel %vm251, %v269, 0.0
        %v276 = vadd.f32 %v274, %v275
        %v277 = vrot.slane %v276, 4
        %v278 = vadd.f32 %v276, %v277
        %v279 = vrot.slane %v278, 2
        %v280 = vadd.f32 %v278, %v279
        %v281 = vrot.slane %v280, 1
        %v282 = vadd.f32 %v280, %v281
        %v283 = vmax.f32 %v282, 0.0
        %v284 = vadd.f32 %v265, %v283
        %289 = vrot.lane.b32.xlu0 %v207, 126
        %v290 = vpop.permute.xlu0 %289
        %291 = vrot.lane.b32.xlu0 %v208, 126
        %v292 = vpop.permute.xlu0 %291
        %293 = vrot.lane.b32.xlu0 %v209, 126
        %v294 = vpop.permute.xlu0 %293
        %295 = vrot.lane.b32.xlu0 %v210, 126
        %v296 = vpop.permute.xlu0 %295
        %v301 = vmul.f32 %v284, %v290
        %v302 = vmul.f32 %v284, %v292
        %v303 = vmul.f32 %v284, %v294
        %v304 = vmul.f32 %v284, %v296
        %v305 = vadd.f32 %v301, 0.0
        %v306 = vadd.f32 %v302, 0.0
        %v307 = vadd.f32 %v303, 0.0
        %v308 = vadd.f32 %v304, 0.0
        %vm309 = vcmask 15368
        %v310 = vsel %vm309, %v247, 0.0
        %v311 = vsel %vm309, %v248, 0.0
        %v312 = vadd.f32 %v310, %v311
        %v313 = vsel %vm309, %v249, 0.0
        %v314 = vadd.f32 %v312, %v313
        %v315 = vsel %vm309, %v250, 0.0
        %v316 = vadd.f32 %v314, %v315
        %v317 = vrot.slane %v316, 4
        %v318 = vadd.f32 %v316, %v317
        %v319 = vrot.slane %v318, 2
        %v320 = vadd.f32 %v318, %v319
        %v321 = vrot.slane %v320, 1
        %v322 = vadd.f32 %v320, %v321
        %v323 = vmax.f32 %v322, 0.0
        %v324 = vsel %vm309, %v266, 0.0
        %v325 = vsel %vm309, %v267, 0.0
        %v326 = vadd.f32 %v324, %v325
        %v327 = vsel %vm309, %v268, 0.0
        %v328 = vadd.f32 %v326, %v327
        %v329 = vsel %vm309, %v269, 0.0
        %v330 = vadd.f32 %v328, %v329
        %v331 = vrot.slane %v330, 4
        %v332 = vadd.f32 %v330, %v331
        %v333 = vrot.slane %v332, 2
        %v334 = vadd.f32 %v332, %v333
        %v335 = vrot.slane %v334, 1
        %v336 = vadd.f32 %v334, %v335
        %v337 = vmax.f32 %v336, 0.0
        %v338 = vadd.f32 %v323, %v337
        %v339 = vmul.f32 %v338, %v290
        %v340 = vmul.f32 %v338, %v292
        %v341 = vmul.f32 %v338, %v294
        %v342 = vmul.f32 %v338, %v296
        %347 = vrot.lane.b32.xlu0 %v339, 127
        %v348 = vpop.permute.xlu0 %347
        %349 = vrot.lane.b32.xlu0 %v340, 127
        %v350 = vpop.permute.xlu0 %349
        %351 = vrot.lane.b32.xlu0 %v341, 127
        %v352 = vpop.permute.xlu0 %351
        %353 = vrot.lane.b32.xlu0 %v342, 127
        %v354 = vpop.permute.xlu0 %353
        %v359 = vadd.f32 %v305, %v348
        %v360 = vadd.f32 %v306, %v350
        %v361 = vadd.f32 %v307, %v352
        %v362 = vadd.f32 %v308, %v354
        %v363 = vxor.u32 %v359, 2147483648
        %v364 = vxor.u32 %v360, 2147483648
        %v365 = vxor.u32 %v361, 2147483648
        %v366 = vxor.u32 %v362, 2147483648
        %v367 = vmul.f32 %v363, 1.442695
        %v368 = vpow.pop %v367
        %v369 = vmul.f32 %v364, 1.442695
        %v370 = vpow.pop %v369
        %v371 = vmul.f32 %v365, 1.442695
        %v372 = vpow.pop %v371
        %v373 = vmul.f32 %v366, 1.442695
        %v374 = vpow.pop %v373
        %v375 = vadd.f32 %v368, 1.0
        %v376 = vadd.f32 %v370, 1.0
        %v377 = vadd.f32 %v372, 1.0
        %v378 = vadd.f32 %v374, 1.0
        %v379 = vrcp.pop %v375
        %v380 = vmul.f32 1.0, %v379
        %v381 = vrcp.pop %v376
        %v382 = vmul.f32 1.0, %v381
        %v383 = vrcp.pop %v377
        %v384 = vmul.f32 1.0, %v383
        %v385 = vrcp.pop %v378
        %v386 = vmul.f32 1.0, %v385
        %387 = vst.msk [vmem:[#allocation3] sm:$0xff] %vm251, %v380
        %388 = vst.msk [vmem:[#allocation3 + $0x8] sm:$0xff] %vm251, %v382
        %389 = vst.msk [vmem:[#allocation3 + $0x10] sm:$0xff] %vm251, %v384
        %390 = vst.msk [vmem:[#allocation3 + $0x18] sm:$0xff] %vm251, %v386
        %v391 = vld [vmem:[%s178] sm:$0xff]
        %v392 = vld [vmem:[%s178 + $0x8] sm:$0xff]
        %v393 = vld [vmem:[%s178 + $0x10] sm:$0xff]
        %v394 = vld [vmem:[%s178 + $0x18] sm:$0xff]
        %v395 = vld [vmem:[%s178 + $0x20] sm:$0xff]
        %v396 = vld [vmem:[%s178 + $0x28] sm:$0xff]
        %v397 = vld [vmem:[%s178 + $0x30] sm:$0xff]
        %v398 = vld [vmem:[%s178 + $0x38] sm:$0xff]
        %400 = vset.pattern.permute.xlu0 0
        %401 = vperm.xlu0 %400, %v380
        %v402 = vpop.permute.xlu0 %401
        %405 = vset.pattern.permute.xlu0 0
        %406 = vperm.xlu0 %405, %v382
        %v407 = vpop.permute.xlu0 %406
        %410 = vset.pattern.permute.xlu0 0
        %411 = vperm.xlu0 %410, %v384
        %v412 = vpop.permute.xlu0 %411
        %415 = vset.pattern.permute.xlu0 0
        %416 = vperm.xlu0 %415, %v386
        %v417 = vpop.permute.xlu0 %416
        %v419 = vmul.f32 %v391, %v402
        %v420 = vmul.f32 %v392, %v402
        %v421 = vmul.f32 %v393, %v407
        %v422 = vmul.f32 %v394, %v407
        %v423 = vmul.f32 %v395, %v412
        %v424 = vmul.f32 %v396, %v412
        %v425 = vmul.f32 %v397, %v417
        %v426 = vmul.f32 %v398, %v417
        %v427 = vadd.f32 %v419, %v421
        %v428 = vadd.f32 %v427, %v423
        %v429 = vadd.f32 %v428, %v425
        %v430 = vrot.slane %v429, 4
        %v431 = vadd.f32 %v429, %v430
        %v432 = vrot.slane %v431, 2
        %v433 = vadd.f32 %v431, %v432
        %v434 = vrot.slane %v433, 1
        %v435 = vadd.f32 %v433, %v434
        %v436 = vadd.f32 %v420, %v422
        %v437 = vadd.f32 %v436, %v424
        %v438 = vadd.f32 %v437, %v426
        %v439 = vrot.slane %v438, 4
        %v440 = vadd.f32 %v438, %v439
        %v441 = vrot.slane %v440, 2
        %v442 = vadd.f32 %v440, %v441
        %v443 = vrot.slane %v442, 1
        %v444 = vadd.f32 %v442, %v443
        %v445 = vmul.f32 %v435, 0.03125
        %v446 = vmul.f32 %v444, 0.03125
        %v449 = vcombine.low %v445, %v446
        %v451 = vunpack.c.l.s4 1966171168
        %v452 = vunpack.c.0.s8 %v451
        %v453 = vlaneseq
        %v454 = vshrl.u32 %v453, 7
        %v455 = vsub.s32 %v452, %v454
        %v456 = vrot.slane %v449, %v455
        %v458 = vunpack.c.l.s4 1966171168
        %v459 = vunpack.c.0.s8 %v458
        %v460 = vlaneseq
        %v461 = vshrl.u32 %v460, 7
        %v462 = vsub.s32 %v459, %v461
        %v463 = vrot.slane %v456, %v462
        %v465 = vlaneseq
        %vm466 = vcmp.ge.s32.totalorder %v465, 0
        %vm467 = vcmp.lt.s32.totalorder %v465, 256
        %vm468 = vmand %vm466, %vm467
        %469 = vst.msk [vmem:[#allocation2] ss:$2 sm:$0x3] %vm468, %v463
        %v470 = vmax.f32 %v419, %v423
        %v471 = vmax.f32 %v421, %v425
        %v472 = vmax.f32 %v470, %v471
        %v473 = vrot.slane %v472, 4
        %v474 = vmax.f32 %v472, %v473
        %v475 = vrot.slane %v474, 2
        %v476 = vmax.f32 %v474, %v475
        %v477 = vrot.slane %v476, 1
        %v478 = vmax.f32 %v476, %v477
        %v479 = vmax.f32 %v420, %v424
        %v480 = vmax.f32 %v422, %v426
        %v481 = vmax.f32 %v479, %v480
        %v482 = vrot.slane %v481, 4
        %v483 = vmax.f32 %v481, %v482
        %v484 = vrot.slane %v483, 2
        %v485 = vmax.f32 %v483, %v484
        %v486 = vrot.slane %v485, 1
        %v487 = vmax.f32 %v485, %v486
        %v490 = vcombine.low %v478, %v487
        %v492 = vunpack.c.l.s4 1966171168
        %v493 = vunpack.c.0.s8 %v492
        %v494 = vlaneseq
        %v495 = vshrl.u32 %v494, 7
        %v496 = vsub.s32 %v493, %v495
        %v497 = vrot.slane %v490, %v496
        %v499 = vunpack.c.l.s4 1966171168
        %v500 = vunpack.c.0.s8 %v499
        %v501 = vlaneseq
        %v502 = vshrl.u32 %v501, 7
        %v503 = vsub.s32 %v500, %v502
        %v504 = vrot.slane %v497, %v503
        %s506 = scalar_lea.vmem [#allocation2], 1
        %507 = vst.msk [vmem:[%s506] ss:$2 sm:$0x3] %vm468, %v504
        %v508 = vld [vmem:[#allocation2] sm:$0xf]
        %s509 = scalar_lea.vmem [#allocation7], 96
        %v510 = vld [vmem:[%s509] sm:$0xf]
        %v511 = vmul.f32 %v510, %v508
        %v514 = vunpack.c.l.s4 1983009808
        %v515 = vunpack.c.0.s8 %v514
        %v516 = vlaneseq
        %v517 = vshrl.u32 %v516, 7
        %v518 = vsub.s32 %v515, %v517
        %v519 = vrot.slane %v508, %v518
        %v520 = vcombine.high %v519, %v519
        %523 = vrot.lane.b32.xlu0 %v519, 51
        %v524 = vpop.permute.xlu0 %523
        %525 = vrot.lane.b32.xlu0 %v520, 51
        %v526 = vpop.permute.xlu0 %525
        %v527 = vlaneseq
        %v528 = vand.u32 %v527, 127
        %vm529 = vcmp.lt.s32.totalorder %v528, 51
        %v530 = vsel %vm529, %v524, %v526
        %v531 = vsel %vm529, %v526, %v524
        %v532 = vld [vmem:[#allocation7] sm:$0xf]
        %v535 = vcombine.low %v531, %v530
        %v537 = vunpack.c.l.s4 1983009808
        %v538 = vunpack.c.0.s8 %v537
        %v539 = vlaneseq
        %v540 = vshrl.u32 %v539, 7
        %v541 = vsub.s32 %v538, %v540
        %v542 = vrot.slane %v535, %v541
        %v544 = vmul.f32 %v532, %v542
        %v545 = vadd.f32 %v511, %v544
        %546 = vrot.lane.b32.xlu0 %v519, 50
        %v547 = vpop.permute.xlu0 %546
        %548 = vrot.lane.b32.xlu0 %v520, 50
        %v549 = vpop.permute.xlu0 %548
        %vm550 = vcmp.lt.s32.totalorder %v528, 50
        %v551 = vsel %vm550, %v547, %v549
        %v552 = vsel %vm550, %v549, %v547
        %s553 = scalar_lea.vmem [#allocation7], 4
        %v554 = vld [vmem:[%s553] sm:$0xf]
        %v557 = vcombine.low %v552, %v551
        %v559 = vunpack.c.l.s4 1983009808
        %v560 = vunpack.c.0.s8 %v559
        %v561 = vlaneseq
        %v562 = vshrl.u32 %v561, 7
        %v563 = vsub.s32 %v560, %v562
        %v564 = vrot.slane %v557, %v563
        %v566 = vmul.f32 %v554, %v564
        %v567 = vadd.f32 %v545, %v566
        %568 = vrot.lane.b32.xlu0 %v519, 49
        %v569 = vpop.permute.xlu0 %568
        %570 = vrot.lane.b32.xlu0 %v520, 49
        %v571 = vpop.permute.xlu0 %570
        %vm572 = vcmp.lt.s32.totalorder %v528, 49
        %v573 = vsel %vm572, %v569, %v571
        %v574 = vsel %vm572, %v571, %v569
        %s575 = scalar_lea.vmem [#allocation7], 8
        %v576 = vld [vmem:[%s575] sm:$0xf]
        %v579 = vcombine.low %v574, %v573
        %v581 = vunpack.c.l.s4 1983009808
        %v582 = vunpack.c.0.s8 %v581
        %v583 = vlaneseq
        %v584 = vshrl.u32 %v583, 7
        %v585 = vsub.s32 %v582, %v584
        %v586 = vrot.slane %v579, %v585
        %v588 = vmul.f32 %v576, %v586
        %v589 = vadd.f32 %v567, %v588
        %590 = vrot.lane.b32.xlu0 %v519, 48
        %v591 = vpop.permute.xlu0 %590
        %592 = vrot.lane.b32.xlu0 %v520, 48
        %v593 = vpop.permute.xlu0 %592
        %vm594 = vcmp.lt.s32.totalorder %v528, 48
        %v595 = vsel %vm594, %v591, %v593
        %v596 = vsel %vm594, %v593, %v591
        %s597 = scalar_lea.vmem [#allocation7], 12
        %v598 = vld [vmem:[%s597] sm:$0xf]
        %v601 = vcombine.low %v596, %v595
        %v603 = vunpack.c.l.s4 1983009808
        %v604 = vunpack.c.0.s8 %v603
        %v605 = vlaneseq
        %v606 = vshrl.u32 %v605, 7
        %v607 = vsub.s32 %v604, %v606
        %v608 = vrot.slane %v601, %v607
        %v610 = vmul.f32 %v598, %v608
        %v611 = vadd.f32 %v589, %v610
        %612 = vrot.lane.b32.xlu0 %v519, 47
        %v613 = vpop.permute.xlu0 %612
        %614 = vrot.lane.b32.xlu0 %v520, 47
        %v615 = vpop.permute.xlu0 %614
        %vm616 = vcmp.lt.s32.totalorder %v528, 47
        %v617 = vsel %vm616, %v613, %v615
        %v618 = vsel %vm616, %v615, %v613
        %s619 = scalar_lea.vmem [#allocation7], 16
        %v620 = vld [vmem:[%s619] sm:$0xf]
        %v623 = vcombine.low %v618, %v617
        %v625 = vunpack.c.l.s4 1983009808
        %v626 = vunpack.c.0.s8 %v625
        %v627 = vlaneseq
        %v628 = vshrl.u32 %v627, 7
        %v629 = vsub.s32 %v626, %v628
        %v630 = vrot.slane %v623, %v629
        %v632 = vmul.f32 %v620, %v630
        %v633 = vadd.f32 %v611, %v632
        %634 = vrot.lane.b32.xlu0 %v519, 46
        %v635 = vpop.permute.xlu0 %634
        %636 = vrot.lane.b32.xlu0 %v520, 46
        %v637 = vpop.permute.xlu0 %636
        %vm638 = vcmp.lt.s32.totalorder %v528, 46
        %v639 = vsel %vm638, %v635, %v637
        %v640 = vsel %vm638, %v637, %v635
        %s641 = scalar_lea.vmem [#allocation7], 20
        %v642 = vld [vmem:[%s641] sm:$0xf]
        %v645 = vcombine.low %v640, %v639
        %v647 = vunpack.c.l.s4 1983009808
        %v648 = vunpack.c.0.s8 %v647
        %v649 = vlaneseq
        %v650 = vshrl.u32 %v649, 7
        %v651 = vsub.s32 %v648, %v650
        %v652 = vrot.slane %v645, %v651
        %v654 = vmul.f32 %v642, %v652
        %v655 = vadd.f32 %v633, %v654
        %656 = vrot.lane.b32.xlu0 %v519, 45
        %v657 = vpop.permute.xlu0 %656
        %658 = vrot.lane.b32.xlu0 %v520, 45
        %v659 = vpop.permute.xlu0 %658
        %vm660 = vcmp.lt.s32.totalorder %v528, 45
        %v661 = vsel %vm660, %v657, %v659
        %v662 = vsel %vm660, %v659, %v657
        %s663 = scalar_lea.vmem [#allocation7], 24
        %v664 = vld [vmem:[%s663] sm:$0xf]
        %v667 = vcombine.low %v662, %v661
        %v669 = vunpack.c.l.s4 1983009808
        %v670 = vunpack.c.0.s8 %v669
        %v671 = vlaneseq
        %v672 = vshrl.u32 %v671, 7
        %v673 = vsub.s32 %v670, %v672
        %v674 = vrot.slane %v667, %v673
        %v676 = vmul.f32 %v664, %v674
        %v677 = vadd.f32 %v655, %v676
        %678 = vrot.lane.b32.xlu0 %v519, 35
        %v679 = vpop.permute.xlu0 %678
        %680 = vrot.lane.b32.xlu0 %v520, 35
        %v681 = vpop.permute.xlu0 %680
        %vm682 = vcmp.lt.s32.totalorder %v528, 35
        %v683 = vsel %vm682, %v679, %v681
        %v684 = vsel %vm682, %v681, %v679
        %s685 = scalar_lea.vmem [#allocation7], 28
        %v686 = vld [vmem:[%s685] sm:$0xf]
        %v689 = vcombine.low %v684, %v683
        %v691 = vunpack.c.l.s4 1983009808
        %v692 = vunpack.c.0.s8 %v691
        %v693 = vlaneseq
        %v694 = vshrl.u32 %v693, 7
        %v695 = vsub.s32 %v692, %v694
        %v696 = vrot.slane %v689, %v695
        %v698 = vmul.f32 %v686, %v696
        %v699 = vadd.f32 %v677, %v698
        %700 = vrot.lane.b32.xlu0 %v519, 34
        %v701 = vpop.permute.xlu0 %700
        %702 = vrot.lane.b32.xlu0 %v520, 34
        %v703 = vpop.permute.xlu0 %702
        %vm704 = vcmp.lt.s32.totalorder %v528, 34
        %v705 = vsel %vm704, %v701, %v703
        %v706 = vsel %vm704, %v703, %v701
        %s707 = scalar_lea.vmem [#allocation7], 32
        %v708 = vld [vmem:[%s707] sm:$0xf]
        %v711 = vcombine.low %v706, %v705
        %v713 = vunpack.c.l.s4 1983009808
        %v714 = vunpack.c.0.s8 %v713
        %v715 = vlaneseq
        %v716 = vshrl.u32 %v715, 7
        %v717 = vsub.s32 %v714, %v716
        %v718 = vrot.slane %v711, %v717
        %v720 = vmul.f32 %v708, %v718
        %v721 = vadd.f32 %v699, %v720
        %722 = vrot.lane.b32.xlu0 %v519, 33
        %v723 = vpop.permute.xlu0 %722
        %724 = vrot.lane.b32.xlu0 %v520, 33
        %v725 = vpop.permute.xlu0 %724
        %vm726 = vcmp.lt.s32.totalorder %v528, 33
        %v727 = vsel %vm726, %v723, %v725
        %v728 = vsel %vm726, %v725, %v723
        %s729 = scalar_lea.vmem [#allocation7], 36
        %v730 = vld [vmem:[%s729] sm:$0xf]
        %v733 = vcombine.low %v728, %v727
        %v735 = vunpack.c.l.s4 1983009808
        %v736 = vunpack.c.0.s8 %v735
        %v737 = vlaneseq
        %v738 = vshrl.u32 %v737, 7
        %v739 = vsub.s32 %v736, %v738
        %v740 = vrot.slane %v733, %v739
        %v742 = vmul.f32 %v730, %v740
        %v743 = vadd.f32 %v721, %v742
        %744 = vrot.lane.b32.xlu0 %v519, 32
        %v745 = vpop.permute.xlu0 %744
        %746 = vrot.lane.b32.xlu0 %v520, 32
        %v747 = vpop.permute.xlu0 %746
        %vm748 = vcmp.lt.s32.totalorder %v528, 32
        %v749 = vsel %vm748, %v745, %v747
        %v750 = vsel %vm748, %v747, %v745
        %s751 = scalar_lea.vmem [#allocation7], 40
        %v752 = vld [vmem:[%s751] sm:$0xf]
        %v755 = vcombine.low %v750, %v749
        %v757 = vunpack.c.l.s4 1983009808
        %v758 = vunpack.c.0.s8 %v757
        %v759 = vlaneseq
        %v760 = vshrl.u32 %v759, 7
        %v761 = vsub.s32 %v758, %v760
        %v762 = vrot.slane %v755, %v761
        %v764 = vmul.f32 %v752, %v762
        %v765 = vadd.f32 %v743, %v764
        %766 = vrot.lane.b32.xlu0 %v519, 31
        %v767 = vpop.permute.xlu0 %766
        %768 = vrot.lane.b32.xlu0 %v520, 31
        %v769 = vpop.permute.xlu0 %768
        %vm770 = vcmp.lt.s32.totalorder %v528, 31
        %v771 = vsel %vm770, %v767, %v769
        %v772 = vsel %vm770, %v769, %v767
        %s773 = scalar_lea.vmem [#allocation7], 44
        %v774 = vld [vmem:[%s773] sm:$0xf]
        %v777 = vcombine.low %v772, %v771
        %v779 = vunpack.c.l.s4 1983009808
        %v780 = vunpack.c.0.s8 %v779
        %v781 = vlaneseq
        %v782 = vshrl.u32 %v781, 7
        %v783 = vsub.s32 %v780, %v782
        %v784 = vrot.slane %v777, %v783
        %v786 = vmul.f32 %v774, %v784
        %v787 = vadd.f32 %v765, %v786
        %788 = vrot.lane.b32.xlu0 %v519, 30
        %v789 = vpop.permute.xlu0 %788
        %790 = vrot.lane.b32.xlu0 %v520, 30
        %v791 = vpop.permute.xlu0 %790
        %vm792 = vcmp.lt.s32.totalorder %v528, 30
        %v793 = vsel %vm792, %v789, %v791
        %v794 = vsel %vm792, %v791, %v789
        %s795 = scalar_lea.vmem [#allocation7], 48
        %v796 = vld [vmem:[%s795] sm:$0xf]
        %v799 = vcombine.low %v794, %v793
        %v801 = vunpack.c.l.s4 1983009808
        %v802 = vunpack.c.0.s8 %v801
        %v803 = vlaneseq
        %v804 = vshrl.u32 %v803, 7
        %v805 = vsub.s32 %v802, %v804
        %v806 = vrot.slane %v799, %v805
        %v808 = vmul.f32 %v796, %v806
        %v809 = vadd.f32 %v787, %v808
        %810 = vrot.lane.b32.xlu0 %v519, 29
        %v811 = vpop.permute.xlu0 %810
        %812 = vrot.lane.b32.xlu0 %v520, 29
        %v813 = vpop.permute.xlu0 %812
        %vm814 = vcmp.lt.s32.totalorder %v528, 29
        %v815 = vsel %vm814, %v811, %v813
        %v816 = vsel %vm814, %v813, %v811
        %s817 = scalar_lea.vmem [#allocation7], 52
        %v818 = vld [vmem:[%s817] sm:$0xf]
        %v821 = vcombine.low %v816, %v815
        %v823 = vunpack.c.l.s4 1983009808
        %v824 = vunpack.c.0.s8 %v823
        %v825 = vlaneseq
        %v826 = vshrl.u32 %v825, 7
        %v827 = vsub.s32 %v824, %v826
        %v828 = vrot.slane %v821, %v827
        %v830 = vmul.f32 %v818, %v828
        %v831 = vadd.f32 %v809, %v830
        %832 = vrot.lane.b32.xlu0 %v519, 19
        %v833 = vpop.permute.xlu0 %832
        %834 = vrot.lane.b32.xlu0 %v520, 19
        %v835 = vpop.permute.xlu0 %834
        %vm836 = vcmp.lt.s32.totalorder %v528, 19
        %v837 = vsel %vm836, %v833, %v835
        %v838 = vsel %vm836, %v835, %v833
        %s839 = scalar_lea.vmem [#allocation7], 56
        %v840 = vld [vmem:[%s839] sm:$0xf]
        %v843 = vcombine.low %v838, %v837
        %v845 = vunpack.c.l.s4 1983009808
        %v846 = vunpack.c.0.s8 %v845
        %v847 = vlaneseq
        %v848 = vshrl.u32 %v847, 7
        %v849 = vsub.s32 %v846, %v848
        %v850 = vrot.slane %v843, %v849
        %v852 = vmul.f32 %v840, %v850
        %v853 = vadd.f32 %v831, %v852
        %854 = vrot.lane.b32.xlu0 %v519, 18
        %v855 = vpop.permute.xlu0 %854
        %856 = vrot.lane.b32.xlu0 %v520, 18
        %v857 = vpop.permute.xlu0 %856
        %vm858 = vcmp.lt.s32.totalorder %v528, 18
        %v859 = vsel %vm858, %v855, %v857
        %v860 = vsel %vm858, %v857, %v855
        %s861 = scalar_lea.vmem [#allocation7], 60
        %v862 = vld [vmem:[%s861] sm:$0xf]
        %v865 = vcombine.low %v860, %v859
        %v867 = vunpack.c.l.s4 1983009808
        %v868 = vunpack.c.0.s8 %v867
        %v869 = vlaneseq
        %v870 = vshrl.u32 %v869, 7
        %v871 = vsub.s32 %v868, %v870
        %v872 = vrot.slane %v865, %v871
        %v874 = vmul.f32 %v862, %v872
        %v875 = vadd.f32 %v853, %v874
        %876 = vrot.lane.b32.xlu0 %v519, 17
        %v877 = vpop.permute.xlu0 %876
        %878 = vrot.lane.b32.xlu0 %v520, 17
        %v879 = vpop.permute.xlu0 %878
        %vm880 = vcmp.lt.s32.totalorder %v528, 17
        %v881 = vsel %vm880, %v877, %v879
        %v882 = vsel %vm880, %v879, %v877
        %s883 = scalar_lea.vmem [#allocation7], 64
        %v884 = vld [vmem:[%s883] sm:$0xf]
        %v887 = vcombine.low %v882, %v881
        %v889 = vunpack.c.l.s4 1983009808
        %v890 = vunpack.c.0.s8 %v889
        %v891 = vlaneseq
        %v892 = vshrl.u32 %v891, 7
        %v893 = vsub.s32 %v890, %v892
        %v894 = vrot.slane %v887, %v893
        %v896 = vmul.f32 %v884, %v894
        %v897 = vadd.f32 %v875, %v896
        %898 = vrot.lane.b32.xlu0 %v519, 16
        %v899 = vpop.permute.xlu0 %898
        %900 = vrot.lane.b32.xlu0 %v520, 16
        %v901 = vpop.permute.xlu0 %900
        %vm902 = vcmp.lt.s32.totalorder %v528, 16
        %v903 = vsel %vm902, %v899, %v901
        %v904 = vsel %vm902, %v901, %v899
        %s905 = scalar_lea.vmem [#allocation7], 68
        %v906 = vld [vmem:[%s905] sm:$0xf]
        %v909 = vcombine.low %v904, %v903
        %v911 = vunpack.c.l.s4 1983009808
        %v912 = vunpack.c.0.s8 %v911
        %v913 = vlaneseq
        %v914 = vshrl.u32 %v913, 7
        %v915 = vsub.s32 %v912, %v914
        %v916 = vrot.slane %v909, %v915
        %v918 = vmul.f32 %v906, %v916
        %v919 = vadd.f32 %v897, %v918
        %920 = vrot.lane.b32.xlu0 %v519, 15
        %v921 = vpop.permute.xlu0 %920
        %922 = vrot.lane.b32.xlu0 %v520, 15
        %v923 = vpop.permute.xlu0 %922
        %vm924 = vcmp.lt.s32.totalorder %v528, 15
        %v925 = vsel %vm924, %v921, %v923
        %v926 = vsel %vm924, %v923, %v921
        %s927 = scalar_lea.vmem [#allocation7], 72
        %v928 = vld [vmem:[%s927] sm:$0xf]
        %v931 = vcombine.low %v926, %v925
        %v933 = vunpack.c.l.s4 1983009808
        %v934 = vunpack.c.0.s8 %v933
        %v935 = vlaneseq
        %v936 = vshrl.u32 %v935, 7
        %v937 = vsub.s32 %v934, %v936
        %v938 = vrot.slane %v931, %v937
        %v940 = vmul.f32 %v928, %v938
        %v941 = vadd.f32 %v919, %v940
        %942 = vrot.lane.b32.xlu0 %v519, 14
        %v943 = vpop.permute.xlu0 %942
        %944 = vrot.lane.b32.xlu0 %v520, 14
        %v945 = vpop.permute.xlu0 %944
        %vm946 = vcmp.lt.s32.totalorder %v528, 14
        %v947 = vsel %vm946, %v943, %v945
        %v948 = vsel %vm946, %v945, %v943
        %s949 = scalar_lea.vmem [#allocation7], 76
        %v950 = vld [vmem:[%s949] sm:$0xf]
        %v953 = vcombine.low %v948, %v947
        %v955 = vunpack.c.l.s4 1983009808
        %v956 = vunpack.c.0.s8 %v955
        %v957 = vlaneseq
        %v958 = vshrl.u32 %v957, 7
        %v959 = vsub.s32 %v956, %v958
        %v960 = vrot.slane %v953, %v959
        %v962 = vmul.f32 %v950, %v960
        %v963 = vadd.f32 %v941, %v962
        %964 = vrot.lane.b32.xlu0 %v519, 13
        %v965 = vpop.permute.xlu0 %964
        %966 = vrot.lane.b32.xlu0 %v520, 13
        %v967 = vpop.permute.xlu0 %966
        %vm968 = vcmp.lt.s32.totalorder %v528, 13
        %v969 = vsel %vm968, %v965, %v967
        %v970 = vsel %vm968, %v967, %v965
        %s971 = scalar_lea.vmem [#allocation7], 80
        %v972 = vld [vmem:[%s971] sm:$0xf]
        %v975 = vcombine.low %v970, %v969
        %v977 = vunpack.c.l.s4 1983009808
        %v978 = vunpack.c.0.s8 %v977
        %v979 = vlaneseq
        %v980 = vshrl.u32 %v979, 7
        %v981 = vsub.s32 %v978, %v980
        %v982 = vrot.slane %v975, %v981
        %v984 = vmul.f32 %v972, %v982
        %v985 = vadd.f32 %v963, %v984
        %986 = vrot.lane.b32.xlu0 %v519, 3
        %v987 = vpop.permute.xlu0 %986
        %988 = vrot.lane.b32.xlu0 %v520, 3
        %v989 = vpop.permute.xlu0 %988
        %vm990 = vcmp.lt.s32.totalorder %v528, 3
        %v991 = vsel %vm990, %v987, %v989
        %v992 = vsel %vm990, %v989, %v987
        %s993 = scalar_lea.vmem [#allocation7], 84
        %v994 = vld [vmem:[%s993] sm:$0xf]
        %v997 = vcombine.low %v992, %v991
        %v999 = vunpack.c.l.s4 1983009808
        %v1000 = vunpack.c.0.s8 %v999
        %v1001 = vlaneseq
        %v1002 = vshrl.u32 %v1001, 7
        %v1003 = vsub.s32 %v1000, %v1002
        %v1004 = vrot.slane %v997, %v1003
        %v1006 = vmul.f32 %v994, %v1004
        %v1007 = vadd.f32 %v985, %v1006
        %1008 = vrot.lane.b32.xlu0 %v519, 2
        %v1009 = vpop.permute.xlu0 %1008
        %1010 = vrot.lane.b32.xlu0 %v520, 2
        %v1011 = vpop.permute.xlu0 %1010
        %vm1012 = vcmp.lt.s32.totalorder %v528, 2
        %v1013 = vsel %vm1012, %v1009, %v1011
        %v1014 = vsel %vm1012, %v1011, %v1009
        %s1015 = scalar_lea.vmem [#allocation7], 88
        %v1016 = vld [vmem:[%s1015] sm:$0xf]
        %v1019 = vcombine.low %v1014, %v1013
        %v1021 = vunpack.c.l.s4 1983009808
        %v1022 = vunpack.c.0.s8 %v1021
        %v1023 = vlaneseq
        %v1024 = vshrl.u32 %v1023, 7
        %v1025 = vsub.s32 %v1022, %v1024
        %v1026 = vrot.slane %v1019, %v1025
        %v1028 = vmul.f32 %v1016, %v1026
        %v1029 = vadd.f32 %v1007, %v1028
        %1030 = vrot.lane.b32.xlu0 %v519, 1
        %v1031 = vpop.permute.xlu0 %1030
        %1032 = vrot.lane.b32.xlu0 %v520, 1
        %v1033 = vpop.permute.xlu0 %1032
        %vm1034 = vcmp.lt.s32.totalorder %v528, 1
        %v1035 = vsel %vm1034, %v1031, %v1033
        %v1036 = vsel %vm1034, %v1033, %v1031
        %s1037 = scalar_lea.vmem [#allocation7], 92
        %v1038 = vld [vmem:[%s1037] sm:$0xf]
        %v1041 = vcombine.low %v1036, %v1035
        %v1043 = vunpack.c.l.s4 1983009808
        %v1044 = vunpack.c.0.s8 %v1043
        %v1045 = vlaneseq
        %v1046 = vshrl.u32 %v1045, 7
        %v1047 = vsub.s32 %v1044, %v1046
        %v1048 = vrot.slane %v1041, %v1047
        %v1050 = vmul.f32 %v1038, %v1048
        %v1051 = vadd.f32 %v1029, %v1050
        %1052 = vrot.lane.b32.xlu0 %v519, 127
        %v1053 = vpop.permute.xlu0 %1052
        %1054 = vrot.lane.b32.xlu0 %v520, 127
        %v1055 = vpop.permute.xlu0 %1054
        %vm1056 = vcmp.lt.s32.totalorder %v528, 127
        %v1057 = vsel %vm1056, %v1053, %v1055
        %v1058 = vsel %vm1056, %v1055, %v1053
        %s1059 = scalar_lea.vmem [#allocation7], 100
        %v1060 = vld [vmem:[%s1059] sm:$0xf]
        %v1063 = vcombine.low %v1057, %v1058
        %v1065 = vunpack.c.l.s4 1983009808
        %v1066 = vunpack.c.0.s8 %v1065
        %v1067 = vlaneseq
        %v1068 = vshrl.u32 %v1067, 7
        %v1069 = vsub.s32 %v1066, %v1068
        %v1070 = vrot.slane %v1063, %v1069
        %v1072 = vmul.f32 %v1060, %v1070
        %v1073 = vadd.f32 %v1051, %v1072
        %1074 = vrot.lane.b32.xlu0 %v519, 126
        %v1075 = vpop.permute.xlu0 %1074
        %1076 = vrot.lane.b32.xlu0 %v520, 126
        %v1077 = vpop.permute.xlu0 %1076
        %vm1078 = vcmp.lt.s32.totalorder %v528, 126
        %v1079 = vsel %vm1078, %v1075, %v1077
        %v1080 = vsel %vm1078, %v1077, %v1075
        %s1081 = scalar_lea.vmem [#allocation7], 104
        %v1082 = vld [vmem:[%s1081] sm:$0xf]
        %v1085 = vcombine.low %v1079, %v1080
        %v1087 = vunpack.c.l.s4 1983009808
        %v1088 = vunpack.c.0.s8 %v1087
        %v1089 = vlaneseq
        %v1090 = vshrl.u32 %v1089, 7
        %v1091 = vsub.s32 %v1088, %v1090
        %v1092 = vrot.slane %v1085, %v1091
        %v1094 = vmul.f32 %v1082, %v1092
        %v1095 = vadd.f32 %v1073, %v1094
        %1096 = vrot.lane.b32.xlu0 %v519, 125
        %v1097 = vpop.permute.xlu0 %1096
        %1098 = vrot.lane.b32.xlu0 %v520, 125
        %v1099 = vpop.permute.xlu0 %1098
        %vm1100 = vcmp.lt.s32.totalorder %v528, 125
        %v1101 = vsel %vm1100, %v1097, %v1099
        %v1102 = vsel %vm1100, %v1099, %v1097
        %s1103 = scalar_lea.vmem [#allocation7], 108
        %v1104 = vld [vmem:[%s1103] sm:$0xf]
        %v1107 = vcombine.low %v1101, %v1102
        %v1109 = vunpack.c.l.s4 1983009808
        %v1110 = vunpack.c.0.s8 %v1109
        %v1111 = vlaneseq
        %v1112 = vshrl.u32 %v1111, 7
        %v1113 = vsub.s32 %v1110, %v1112
        %v1114 = vrot.slane %v1107, %v1113
        %v1116 = vmul.f32 %v1104, %v1114
        %v1117 = vadd.f32 %v1095, %v1116
        %1118 = vrot.lane.b32.xlu0 %v519, 115
        %v1119 = vpop.permute.xlu0 %1118
        %1120 = vrot.lane.b32.xlu0 %v520, 115
        %v1121 = vpop.permute.xlu0 %1120
        %vm1122 = vcmp.lt.s32.totalorder %v528, 115
        %v1123 = vsel %vm1122, %v1119, %v1121
        %v1124 = vsel %vm1122, %v1121, %v1119
        %s1125 = scalar_lea.vmem [#allocation7], 112
        %v1126 = vld [vmem:[%s1125] sm:$0xf]
        %v1129 = vcombine.low %v1123, %v1124
        %v1131 = vunpack.c.l.s4 1983009808
        %v1132 = vunpack.c.0.s8 %v1131
        %v1133 = vlaneseq
        %v1134 = vshrl.u32 %v1133, 7
        %v1135 = vsub.s32 %v1132, %v1134
        %v1136 = vrot.slane %v1129, %v1135
        %v1138 = vmul.f32 %v1126, %v1136
        %v1139 = vadd.f32 %v1117, %v1138
        %1140 = vrot.lane.b32.xlu0 %v519, 114
        %v1141 = vpop.permute.xlu0 %1140
        %1142 = vrot.lane.b32.xlu0 %v520, 114
        %v1143 = vpop.permute.xlu0 %1142
        %vm1144 = vcmp.lt.s32.totalorder %v528, 114
        %v1145 = vsel %vm1144, %v1141, %v1143
        %v1146 = vsel %vm1144, %v1143, %v1141
        %s1147 = scalar_lea.vmem [#allocation7], 116
        %v1148 = vld [vmem:[%s1147] sm:$0xf]
        %v1151 = vcombine.low %v1145, %v1146
        %v1153 = vunpack.c.l.s4 1983009808
        %v1154 = vunpack.c.0.s8 %v1153
        %v1155 = vlaneseq
        %v1156 = vshrl.u32 %v1155, 7
        %v1157 = vsub.s32 %v1154, %v1156
        %v1158 = vrot.slane %v1151, %v1157
        %v1160 = vmul.f32 %v1148, %v1158
        %v1161 = vadd.f32 %v1139, %v1160
        %1162 = vrot.lane.b32.xlu0 %v519, 113
        %v1163 = vpop.permute.xlu0 %1162
        %1164 = vrot.lane.b32.xlu0 %v520, 113
        %v1165 = vpop.permute.xlu0 %1164
        %vm1166 = vcmp.lt.s32.totalorder %v528, 113
        %v1167 = vsel %vm1166, %v1163, %v1165
        %v1168 = vsel %vm1166, %v1165, %v1163
        %s1169 = scalar_lea.vmem [#allocation7], 120
        %v1170 = vld [vmem:[%s1169] sm:$0xf]
        %v1173 = vcombine.low %v1167, %v1168
        %v1175 = vunpack.c.l.s4 1983009808
        %v1176 = vunpack.c.0.s8 %v1175
        %v1177 = vlaneseq
        %v1178 = vshrl.u32 %v1177, 7
        %v1179 = vsub.s32 %v1176, %v1178
        %v1180 = vrot.slane %v1173, %v1179
        %v1182 = vmul.f32 %v1170, %v1180
        %v1183 = vadd.f32 %v1161, %v1182
        %1184 = vrot.lane.b32.xlu0 %v519, 112
        %v1185 = vpop.permute.xlu0 %1184
        %1186 = vrot.lane.b32.xlu0 %v520, 112
        %v1187 = vpop.permute.xlu0 %1186
        %vm1188 = vcmp.lt.s32.totalorder %v528, 112
        %v1189 = vsel %vm1188, %v1185, %v1187
        %v1190 = vsel %vm1188, %v1187, %v1185
        %s1191 = scalar_lea.vmem [#allocation7], 124
        %v1192 = vld [vmem:[%s1191] sm:$0xf]
        %v1195 = vcombine.low %v1189, %v1190
        %v1197 = vunpack.c.l.s4 1983009808
        %v1198 = vunpack.c.0.s8 %v1197
        %v1199 = vlaneseq
        %v1200 = vshrl.u32 %v1199, 7
        %v1201 = vsub.s32 %v1198, %v1200
        %v1202 = vrot.slane %v1195, %v1201
        %v1204 = vmul.f32 %v1192, %v1202
        %v1205 = vadd.f32 %v1183, %v1204
        %1206 = vrot.lane.b32.xlu0 %v519, 111
        %v1207 = vpop.permute.xlu0 %1206
        %1208 = vrot.lane.b32.xlu0 %v520, 111
        %v1209 = vpop.permute.xlu0 %1208
        %vm1210 = vcmp.lt.s32.totalorder %v528, 111
        %v1211 = vsel %vm1210, %v1207, %v1209
        %v1212 = vsel %vm1210, %v1209, %v1207
        %s1213 = scalar_lea.vmem [#allocation7], 128
        %v1214 = vld [vmem:[%s1213] sm:$0xf]
        %v1217 = vcombine.low %v1211, %v1212
        %v1219 = vunpack.c.l.s4 1983009808
        %v1220 = vunpack.c.0.s8 %v1219
        %v1221 = vlaneseq
        %v1222 = vshrl.u32 %v1221, 7
        %v1223 = vsub.s32 %v1220, %v1222
        %v1224 = vrot.slane %v1217, %v1223
        %v1226 = vmul.f32 %v1214, %v1224
        %v1227 = vadd.f32 %v1205, %v1226
        %1228 = vrot.lane.b32.xlu0 %v519, 110
        %v1229 = vpop.permute.xlu0 %1228
        %1230 = vrot.lane.b32.xlu0 %v520, 110
        %v1231 = vpop.permute.xlu0 %1230
        %vm1232 = vcmp.lt.s32.totalorder %v528, 110
        %v1233 = vsel %vm1232, %v1229, %v1231
        %v1234 = vsel %vm1232, %v1231, %v1229
        %s1235 = scalar_lea.vmem [#allocation7], 132
        %v1236 = vld [vmem:[%s1235] sm:$0xf]
        %v1239 = vcombine.low %v1233, %v1234
        %v1241 = vunpack.c.l.s4 1983009808
        %v1242 = vunpack.c.0.s8 %v1241
        %v1243 = vlaneseq
        %v1244 = vshrl.u32 %v1243, 7
        %v1245 = vsub.s32 %v1242, %v1244
        %v1246 = vrot.slane %v1239, %v1245
        %v1248 = vmul.f32 %v1236, %v1246
        %v1249 = vadd.f32 %v1227, %v1248
        %1250 = vrot.lane.b32.xlu0 %v519, 109
        %v1251 = vpop.permute.xlu0 %1250
        %1252 = vrot.lane.b32.xlu0 %v520, 109
        %v1253 = vpop.permute.xlu0 %1252
        %vm1254 = vcmp.lt.s32.totalorder %v528, 109
        %v1255 = vsel %vm1254, %v1251, %v1253
        %v1256 = vsel %vm1254, %v1253, %v1251
        %s1257 = scalar_lea.vmem [#allocation7], 136
        %v1258 = vld [vmem:[%s1257] sm:$0xf]
        %v1261 = vcombine.low %v1255, %v1256
        %v1263 = vunpack.c.l.s4 1983009808
        %v1264 = vunpack.c.0.s8 %v1263
        %v1265 = vlaneseq
        %v1266 = vshrl.u32 %v1265, 7
        %v1267 = vsub.s32 %v1264, %v1266
        %v1268 = vrot.slane %v1261, %v1267
        %v1270 = vmul.f32 %v1258, %v1268
        %v1271 = vadd.f32 %v1249, %v1270
        %1272 = vrot.lane.b32.xlu0 %v519, 99
        %v1273 = vpop.permute.xlu0 %1272
        %1274 = vrot.lane.b32.xlu0 %v520, 99
        %v1275 = vpop.permute.xlu0 %1274
        %vm1276 = vcmp.lt.s32.totalorder %v528, 99
        %v1277 = vsel %vm1276, %v1273, %v1275
        %v1278 = vsel %vm1276, %v1275, %v1273
        %s1279 = scalar_lea.vmem [#allocation7], 140
        %v1280 = vld [vmem:[%s1279] sm:$0xf]
        %v1283 = vcombine.low %v1277, %v1278
        %v1285 = vunpack.c.l.s4 1983009808
        %v1286 = vunpack.c.0.s8 %v1285
        %v1287 = vlaneseq
        %v1288 = vshrl.u32 %v1287, 7
        %v1289 = vsub.s32 %v1286, %v1288
        %v1290 = vrot.slane %v1283, %v1289
        %v1292 = vmul.f32 %v1280, %v1290
        %v1293 = vadd.f32 %v1271, %v1292
        %1294 = vrot.lane.b32.xlu0 %v519, 98
        %v1295 = vpop.permute.xlu0 %1294
        %1296 = vrot.lane.b32.xlu0 %v520, 98
        %v1297 = vpop.permute.xlu0 %1296
        %vm1298 = vcmp.lt.s32.totalorder %v528, 98
        %v1299 = vsel %vm1298, %v1295, %v1297
        %v1300 = vsel %vm1298, %v1297, %v1295
        %s1301 = scalar_lea.vmem [#allocation7], 144
        %v1302 = vld [vmem:[%s1301] sm:$0xf]
        %v1305 = vcombine.low %v1299, %v1300
        %v1307 = vunpack.c.l.s4 1983009808
        %v1308 = vunpack.c.0.s8 %v1307
        %v1309 = vlaneseq
        %v1310 = vshrl.u32 %v1309, 7
        %v1311 = vsub.s32 %v1308, %v1310
        %v1312 = vrot.slane %v1305, %v1311
        %v1314 = vmul.f32 %v1302, %v1312
        %v1315 = vadd.f32 %v1293, %v1314
        %1316 = vrot.lane.b32.xlu0 %v519, 97
        %v1317 = vpop.permute.xlu0 %1316
        %1318 = vrot.lane.b32.xlu0 %v520, 97
        %v1319 = vpop.permute.xlu0 %1318
        %vm1320 = vcmp.lt.s32.totalorder %v528, 97
        %v1321 = vsel %vm1320, %v1317, %v1319
        %v1322 = vsel %vm1320, %v1319, %v1317
        %s1323 = scalar_lea.vmem [#allocation7], 148
        %v1324 = vld [vmem:[%s1323] sm:$0xf]
        %v1327 = vcombine.low %v1321, %v1322
        %v1329 = vunpack.c.l.s4 1983009808
        %v1330 = vunpack.c.0.s8 %v1329
        %v1331 = vlaneseq
        %v1332 = vshrl.u32 %v1331, 7
        %v1333 = vsub.s32 %v1330, %v1332
        %v1334 = vrot.slane %v1327, %v1333
        %v1336 = vmul.f32 %v1324, %v1334
        %v1337 = vadd.f32 %v1315, %v1336
        %1338 = vrot.lane.b32.xlu0 %v519, 96
        %v1339 = vpop.permute.xlu0 %1338
        %1340 = vrot.lane.b32.xlu0 %v520, 96
        %v1341 = vpop.permute.xlu0 %1340
        %vm1342 = vcmp.lt.s32.totalorder %v528, 96
        %v1343 = vsel %vm1342, %v1339, %v1341
        %v1344 = vsel %vm1342, %v1341, %v1339
        %s1345 = scalar_lea.vmem [#allocation7], 152
        %v1346 = vld [vmem:[%s1345] sm:$0xf]
        %v1349 = vcombine.low %v1343, %v1344
        %v1351 = vunpack.c.l.s4 1983009808
        %v1352 = vunpack.c.0.s8 %v1351
        %v1353 = vlaneseq
        %v1354 = vshrl.u32 %v1353, 7
        %v1355 = vsub.s32 %v1352, %v1354
        %v1356 = vrot.slane %v1349, %v1355
        %v1358 = vmul.f32 %v1346, %v1356
        %v1359 = vadd.f32 %v1337, %v1358
        %1360 = vrot.lane.b32.xlu0 %v519, 95
        %v1361 = vpop.permute.xlu0 %1360
        %1362 = vrot.lane.b32.xlu0 %v520, 95
        %v1363 = vpop.permute.xlu0 %1362
        %vm1364 = vcmp.lt.s32.totalorder %v528, 95
        %v1365 = vsel %vm1364, %v1361, %v1363
        %v1366 = vsel %vm1364, %v1363, %v1361
        %s1367 = scalar_lea.vmem [#allocation7], 156
        %v1368 = vld [vmem:[%s1367] sm:$0xf]
        %v1371 = vcombine.low %v1365, %v1366
        %v1373 = vunpack.c.l.s4 1983009808
        %v1374 = vunpack.c.0.s8 %v1373
        %v1375 = vlaneseq
        %v1376 = vshrl.u32 %v1375, 7
        %v1377 = vsub.s32 %v1374, %v1376
        %v1378 = vrot.slane %v1371, %v1377
        %v1380 = vmul.f32 %v1368, %v1378
        %v1381 = vadd.f32 %v1359, %v1380
        %1382 = vrot.lane.b32.xlu0 %v519, 94
        %v1383 = vpop.permute.xlu0 %1382
        %1384 = vrot.lane.b32.xlu0 %v520, 94
        %v1385 = vpop.permute.xlu0 %1384
        %vm1386 = vcmp.lt.s32.totalorder %v528, 94
        %v1387 = vsel %vm1386, %v1383, %v1385
        %v1388 = vsel %vm1386, %v1385, %v1383
        %s1389 = scalar_lea.vmem [#allocation7], 160
        %v1390 = vld [vmem:[%s1389] sm:$0xf]
        %v1393 = vcombine.low %v1387, %v1388
        %v1395 = vunpack.c.l.s4 1983009808
        %v1396 = vunpack.c.0.s8 %v1395
        %v1397 = vlaneseq
        %v1398 = vshrl.u32 %v1397, 7
        %v1399 = vsub.s32 %v1396, %v1398
        %v1400 = vrot.slane %v1393, %v1399
        %v1402 = vmul.f32 %v1390, %v1400
        %v1403 = vadd.f32 %v1381, %v1402
        %1404 = vrot.lane.b32.xlu0 %v519, 93
        %v1405 = vpop.permute.xlu0 %1404
        %1406 = vrot.lane.b32.xlu0 %v520, 93
        %v1407 = vpop.permute.xlu0 %1406
        %vm1408 = vcmp.lt.s32.totalorder %v528, 93
        %v1409 = vsel %vm1408, %v1405, %v1407
        %v1410 = vsel %vm1408, %v1407, %v1405
        %s1411 = scalar_lea.vmem [#allocation7], 164
        %v1412 = vld [vmem:[%s1411] sm:$0xf]
        %v1415 = vcombine.low %v1409, %v1410
        %v1417 = vunpack.c.l.s4 1983009808
        %v1418 = vunpack.c.0.s8 %v1417
        %v1419 = vlaneseq
        %v1420 = vshrl.u32 %v1419, 7
        %v1421 = vsub.s32 %v1418, %v1420
        %v1422 = vrot.slane %v1415, %v1421
        %v1424 = vmul.f32 %v1412, %v1422
        %v1425 = vadd.f32 %v1403, %v1424
        %1426 = vrot.lane.b32.xlu0 %v519, 83
        %v1427 = vpop.permute.xlu0 %1426
        %1428 = vrot.lane.b32.xlu0 %v520, 83
        %v1429 = vpop.permute.xlu0 %1428
        %vm1430 = vcmp.lt.s32.totalorder %v528, 83
        %v1431 = vsel %vm1430, %v1427, %v1429
        %v1432 = vsel %vm1430, %v1429, %v1427
        %s1433 = scalar_lea.vmem [#allocation7], 168
        %v1434 = vld [vmem:[%s1433] sm:$0xf]
        %v1437 = vcombine.low %v1431, %v1432
        %v1439 = vunpack.c.l.s4 1983009808
        %v1440 = vunpack.c.0.s8 %v1439
        %v1441 = vlaneseq
        %v1442 = vshrl.u32 %v1441, 7
        %v1443 = vsub.s32 %v1440, %v1442
        %v1444 = vrot.slane %v1437, %v1443
        %v1446 = vmul.f32 %v1434, %v1444
        %v1447 = vadd.f32 %v1425, %v1446
        %1448 = vrot.lane.b32.xlu0 %v519, 82
        %v1449 = vpop.permute.xlu0 %1448
        %1450 = vrot.lane.b32.xlu0 %v520, 82
        %v1451 = vpop.permute.xlu0 %1450
        %vm1452 = vcmp.lt.s32.totalorder %v528, 82
        %v1453 = vsel %vm1452, %v1449, %v1451
        %v1454 = vsel %vm1452, %v1451, %v1449
        %s1455 = scalar_lea.vmem [#allocation7], 172
        %v1456 = vld [vmem:[%s1455] sm:$0xf]
        %v1459 = vcombine.low %v1453, %v1454
        %v1461 = vunpack.c.l.s4 1983009808
        %v1462 = vunpack.c.0.s8 %v1461
        %v1463 = vlaneseq
        %v1464 = vshrl.u32 %v1463, 7
        %v1465 = vsub.s32 %v1462, %v1464
        %v1466 = vrot.slane %v1459, %v1465
        %v1468 = vmul.f32 %v1456, %v1466
        %v1469 = vadd.f32 %v1447, %v1468
        %1470 = vrot.lane.b32.xlu0 %v519, 81
        %v1471 = vpop.permute.xlu0 %1470
        %1472 = vrot.lane.b32.xlu0 %v520, 81
        %v1473 = vpop.permute.xlu0 %1472
        %vm1474 = vcmp.lt.s32.totalorder %v528, 81
        %v1475 = vsel %vm1474, %v1471, %v1473
        %v1476 = vsel %vm1474, %v1473, %v1471
        %s1477 = scalar_lea.vmem [#allocation7], 176
        %v1478 = vld [vmem:[%s1477] sm:$0xf]
        %v1481 = vcombine.low %v1475, %v1476
        %v1483 = vunpack.c.l.s4 1983009808
        %v1484 = vunpack.c.0.s8 %v1483
        %v1485 = vlaneseq
        %v1486 = vshrl.u32 %v1485, 7
        %v1487 = vsub.s32 %v1484, %v1486
        %v1488 = vrot.slane %v1481, %v1487
        %v1490 = vmul.f32 %v1478, %v1488
        %v1491 = vadd.f32 %v1469, %v1490
        %1492 = vrot.lane.b32.xlu0 %v519, 80
        %v1493 = vpop.permute.xlu0 %1492
        %1494 = vrot.lane.b32.xlu0 %v520, 80
        %v1495 = vpop.permute.xlu0 %1494
        %vm1496 = vcmp.lt.s32.totalorder %v528, 80
        %v1497 = vsel %vm1496, %v1493, %v1495
        %v1498 = vsel %vm1496, %v1495, %v1493
        %s1499 = scalar_lea.vmem [#allocation7], 180
        %v1500 = vld [vmem:[%s1499] sm:$0xf]
        %v1503 = vcombine.low %v1497, %v1498
        %v1505 = vunpack.c.l.s4 1983009808
        %v1506 = vunpack.c.0.s8 %v1505
        %v1507 = vlaneseq
        %v1508 = vshrl.u32 %v1507, 7
        %v1509 = vsub.s32 %v1506, %v1508
        %v1510 = vrot.slane %v1503, %v1509
        %v1512 = vmul.f32 %v1500, %v1510
        %v1513 = vadd.f32 %v1491, %v1512
        %1514 = vrot.lane.b32.xlu0 %v519, 79
        %v1515 = vpop.permute.xlu0 %1514
        %1516 = vrot.lane.b32.xlu0 %v520, 79
        %v1517 = vpop.permute.xlu0 %1516
        %vm1518 = vcmp.lt.s32.totalorder %v528, 79
        %v1519 = vsel %vm1518, %v1515, %v1517
        %v1520 = vsel %vm1518, %v1517, %v1515
        %s1521 = scalar_lea.vmem [#allocation7], 184
        %v1522 = vld [vmem:[%s1521] sm:$0xf]
        %v1525 = vcombine.low %v1519, %v1520
        %v1527 = vunpack.c.l.s4 1983009808
        %v1528 = vunpack.c.0.s8 %v1527
        %v1529 = vlaneseq
        %v1530 = vshrl.u32 %v1529, 7
        %v1531 = vsub.s32 %v1528, %v1530
        %v1532 = vrot.slane %v1525, %v1531
        %v1534 = vmul.f32 %v1522, %v1532
        %v1535 = vadd.f32 %v1513, %v1534
        %1536 = vrot.lane.b32.xlu0 %v519, 78
        %v1537 = vpop.permute.xlu0 %1536
        %1538 = vrot.lane.b32.xlu0 %v520, 78
        %v1539 = vpop.permute.xlu0 %1538
        %vm1540 = vcmp.lt.s32.totalorder %v528, 78
        %v1541 = vsel %vm1540, %v1537, %v1539
        %v1542 = vsel %vm1540, %v1539, %v1537
        %s1543 = scalar_lea.vmem [#allocation7], 188
        %v1544 = vld [vmem:[%s1543] sm:$0xf]
        %v1547 = vcombine.low %v1541, %v1542
        %v1549 = vunpack.c.l.s4 1983009808
        %v1550 = vunpack.c.0.s8 %v1549
        %v1551 = vlaneseq
        %v1552 = vshrl.u32 %v1551, 7
        %v1553 = vsub.s32 %v1550, %v1552
        %v1554 = vrot.slane %v1547, %v1553
        %v1556 = vmul.f32 %v1544, %v1554
        %v1557 = vadd.f32 %v1535, %v1556
        %1558 = vrot.lane.b32.xlu0 %v519, 77
        %v1559 = vpop.permute.xlu0 %1558
        %1560 = vrot.lane.b32.xlu0 %v520, 77
        %v1561 = vpop.permute.xlu0 %1560
        %vm1562 = vcmp.lt.s32.totalorder %v528, 77
        %v1563 = vsel %vm1562, %v1559, %v1561
        %v1564 = vsel %vm1562, %v1561, %v1559
        %s1565 = scalar_lea.vmem [#allocation7], 192
        %v1566 = vld [vmem:[%s1565] sm:$0xf]
        %v1569 = vcombine.low %v1563, %v1564
        %v1571 = vunpack.c.l.s4 1983009808
        %v1572 = vunpack.c.0.s8 %v1571
        %v1573 = vlaneseq
        %v1574 = vshrl.u32 %v1573, 7
        %v1575 = vsub.s32 %v1572, %v1574
        %v1576 = vrot.slane %v1569, %v1575
        %v1578 = vmul.f32 %v1566, %v1576
        %v1579 = vadd.f32 %v1557, %v1578
        %v1581 = vrot.slane %v1579, 7
        %v1582 = vrot.slane %v1581, 2
        %v1584 = vadd.f32 %v1579, %v1582
        %v1585 = vxor.u32 %v1584, 2147483648
        %v1586 = vmul.f32 %v1585, 1.442695
        %v1587 = vpow.pop %v1586
        %v1588 = vadd.f32 %v1587, 1.0
        %v1589 = vrcp.pop %v1588
        %v1590 = vmul.f32 1.0, %v1589
        %v1591 = vld [vmem:[#allocation3] sm:$0xff]
        %v1592 = vld [vmem:[#allocation3 + $0x8] sm:$0xff]
        %v1593 = vld [vmem:[#allocation3 + $0x10] sm:$0xff]
        %v1594 = vld [vmem:[#allocation3 + $0x18] sm:$0xff]
        %v1595 = vld [vmem:[%s178] sm:$0xff]
        %v1596 = vld [vmem:[%s178 + $0x8] sm:$0xff]
        %v1597 = vld [vmem:[%s178 + $0x10] sm:$0xff]
        %v1598 = vld [vmem:[%s178 + $0x18] sm:$0xff]
        %v1599 = vld [vmem:[%s178 + $0x20] sm:$0xff]
        %v1600 = vld [vmem:[%s178 + $0x28] sm:$0xff]
        %v1601 = vld [vmem:[%s178 + $0x30] sm:$0xff]
        %v1602 = vld [vmem:[%s178 + $0x38] sm:$0xff]
        %1604 = vset.pattern.permute.xlu0 0
        %1605 = vperm.xlu0 %1604, %v1591
        %v1606 = vpop.permute.xlu0 %1605
        %1609 = vset.pattern.permute.xlu0 0
        %1610 = vperm.xlu0 %1609, %v1592
        %v1611 = vpop.permute.xlu0 %1610
        %1614 = vset.pattern.permute.xlu0 0
        %1615 = vperm.xlu0 %1614, %v1593
        %v1616 = vpop.permute.xlu0 %1615
        %1619 = vset.pattern.permute.xlu0 0
        %1620 = vperm.xlu0 %1619, %v1594
        %v1621 = vpop.permute.xlu0 %1620
        %v1623 = vmul.f32 %v1595, %v1606
        %v1624 = vmul.f32 %v1596, %v1606
        %v1625 = vmul.f32 %v1597, %v1611
        %v1626 = vmul.f32 %v1598, %v1611
        %v1627 = vmul.f32 %v1599, %v1616
        %v1628 = vmul.f32 %v1600, %v1616
        %v1629 = vmul.f32 %v1601, %v1621
        %v1630 = vmul.f32 %v1602, %v1621
        %v1632 = vlaneseq
        %v1633 = vshrl.u32 %v1632, 7
        %v1634 = vsub.s32 0, %v1633
        %v1635 = vrot.slane %v1590, %v1634
        %v1636 = vlaneseq
        %v1637 = vshrl.u32 %v1636, 7
        %v1638 = vsub.s32 2, %v1637
        %v1639 = vrot.slane %v1590, %v1638
        %v1642 = vlaneseq
        %v1643 = vshrl.u32 %v1642, 7
        %v1644 = vsub.s32 0, %v1643
        %v1645 = vrot.slane %v1635, %v1644
        %v1646 = vlaneseq
        %v1647 = vshrl.u32 %v1646, 7
        %v1648 = vsub.s32 0, %v1647
        %v1649 = vrot.slane %v1639, %v1648
        %v1650 = vmul.f32 %v1623, %v1645
        %v1651 = vmul.f32 %v1624, %v1649
        %v1652 = vmul.f32 %v1625, %v1645
        %v1653 = vmul.f32 %v1626, %v1649
        %v1654 = vmul.f32 %v1627, %v1645
        %v1655 = vmul.f32 %v1628, %v1649
        %v1656 = vmul.f32 %v1629, %v1645
        %v1657 = vmul.f32 %v1630, %v1649
        %1658 = vst [vmem:[%s204] sm:$0xff] %v1650
        %1659 = vst [vmem:[%s204 + $0x8] sm:$0xff] %v1651
        %1660 = vst [vmem:[%s204 + $0x10] sm:$0xff] %v1652
        %1661 = vst [vmem:[%s204 + $0x18] sm:$0xff] %v1653
        %1662 = vst [vmem:[%s204 + $0x20] sm:$0xff] %v1654
        %1663 = vst [vmem:[%s204 + $0x28] sm:$0xff] %v1655
        %1664 = vst [vmem:[%s204 + $0x30] sm:$0xff] %v1656
        %1665 = vst [vmem:[%s204 + $0x38] sm:$0xff] %v1657
        %s1666 = sand.u32 %s97, 1
        %s1667 = scalar_lea.sflag [#allocation6], %s1666
        %s1668 = sand.u32 %s97, 1
        %s1669 = smul.addr %s1668, 64
        %s1670 = scalar_lea.vmem [#allocation9], %s1669
        // Predicated region
        $region41: #{tpu_custom_call.1} parent=31 // pred_check
          %p1671 = pneg %p107
        $region42: #{tpu_custom_call.1} parent=31 // pred_check_branch
          %1673 = sbr.rel (%p1671) target = $region44
        $region43: #{tpu_custom_call.1} parent=31 // pred_region
          %s1674 = smul.u32 4, %s21
          %s1676 = ssub.s32 1024, 1024
          %1677 = vsyncadd %s1667, %s1676
          %s1678 = smul.addr %s1674, 2
          %s1679 = smul.addr %s1678, 128
          %s1680 = scalar_lea.hbm %s3, %s1679
          %s1681 = sshll.u32 %s1670, 4
          %s1682 = int_to_ptr.vmem [resolvable:$true] %s1681
          %1687 = dma.vmem_to_hbm [thread:$0]  %s1682, 1024, %s1680, %s1667, 256, 256, 16
        $region44: #{tpu_custom_call.1} parent=31 // pred_fallthru
          _
      $region32: #{tpu_custom_call.1} parent=5 // pred_fallthru
        _
      %p1688 = scmp.le.s32.totalorder 2, %s16
      // Predicated region
      $region45: #{tpu_custom_call.1} parent=5 // pred_check
        %p1689 = pneg %p1688
      $region46: #{tpu_custom_call.1} parent=5 // pred_check_branch
        %1691 = sbr.rel (%p1689) target = $region48
      $region47: #{tpu_custom_call.1} parent=5 // pred_region
        %s1692 = ssub.s32 %s16, 2
        // Predicated region
        $region49: #{tpu_custom_call.1} parent=47 // pred_check
          %p1693 = pneg %p113
        $region50: #{tpu_custom_call.1} parent=47 // pred_check_branch
          %1695 = sbr.rel (%p1693) target = $region52
        $region51: #{tpu_custom_call.1} parent=47 // pred_region
          %s1696 = sand.u32 %s98, 1
          %s1697 = scalar_lea.sflag [#allocation6], %s1696
          %s1698 = sand.u32 %s98, 1
          %s1699 = smul.addr %s1698, 64
          %s1700 = scalar_lea.vmem [#allocation9], %s1699
          %1701 = dma.done %s1697, 1024
        $region52: #{tpu_custom_call.1} parent=47 // pred_fallthru
          _
      $region48: #{tpu_custom_call.1} parent=5 // pred_fallthru
        _
    $region6: #{tpu_custom_call.1} parent=1 // loop_footer
      %s20 = sadd.s32 1, %s16
    $region7: #{tpu_custom_call.1} parent=1 // loop_footer_branch
      %15 = sbr.rel target = $region3
    $region8: #{tpu_custom_call.1} parent=1 // loop_exit
      _
    %1702 = vsyncpa [#allocation5], 1
    %s1703 = scalar_lea.sflag [#allocation5], 1
    %1704 = vsyncpa %s1703, 1
    %1705 = vsyncpa [#allocation8], 1
    %1706 = vsyncpa [#allocation6], 1
    %s1707 = scalar_lea.sflag [#allocation6], 1
    %1708 = vsyncpa %s1707, 1

</llo_original>
